<compile_context>
chip_gen: v5e
topology: v5e:2x2
jax: 0.10.0
libtpu: 0.0.40
codegen_flags: <defaults>
</compile_context>

<pallas_src>
import jax
import jax.numpy as jnp
from jax.experimental import pallas as pl
from jax.experimental.pallas import tpu as pltpu

IN_F = 1664     # 13 * 128 -> lane-aligned
HID_F = 416
OUT_F = 1
BN_EPS = 1e-5
MAX_TB = 512    # batch-tile cap; sized against v5e's 16 MiB scoped-VMEM default


def classifier_kernel(x_ref, w1_ref, b1_ref, w2_ref, b2_ref, o_ref):
    # ---- Linear1 with folded BatchNorm: bf16 operands, f32 MXU accumulation ----
    h = jnp.dot(x_ref[...], w1_ref[...], preferred_element_type=jnp.float32)
    h = h + b1_ref[...]                     # folded (b1 - mean)*scale + beta

    # ---- ReLU (f32, VPU) ----
    h = jnp.maximum(h, 0.0)

    # ---- Linear2 (416 -> 1): N=1 matmul wastes the MXU, so do a VPU multiply
    #      + cross-lane reduction (XLU) instead, with w2 as a (1, 416) row. ----
    logit = jnp.sum(h * w2_ref[...], axis=-1, keepdims=True) + b2_ref[...]

    # ---- Sigmoid (EUP) ----
    o_ref[...] = jax.nn.sigmoid(logit).astype(o_ref.dtype)


def _round_up(n, m):
    return ((n + m - 1) // m) * m


def fold_bn_into_linear(params):
    """Fold eval-mode BatchNorm into Linear1 and pre-layout Linear2.

    Returns (w1_folded bf16 (IN_F,HID_F), b1_folded f32 (1,HID_F),
             w2_row f32 (1,HID_F), b2 f32 (1,1)). One-time host-side precompute.
    """
    w1, b1, gamma, beta, mean, var, w2, b2 = params
    scale = gamma * jax.lax.rsqrt(var + BN_EPS)            # (1, HID_F)
    w1f = (w1 * scale).astype(jnp.bfloat16)                # (IN_F, HID_F)
    b1f = ((b1 - mean) * scale + beta).astype(jnp.float32)  # (1, HID_F)
    w2r = w2.reshape(1, HID_F).astype(jnp.float32)          # (1, HID_F) row
    b2f = b2.reshape(1, OUT_F).astype(jnp.float32)          # (1, 1)
    return w1f, b1f, w2r, b2f


def classifier_forward(x, folded_params, *, max_tb=MAX_TB):
    """x: (B, 1664) float32 -> (B, 1) float32 (eval-mode BatchNorm)."""
    w1f, b1f, w2r, b2f = folded_params
    B, F = x.shape
    assert F == IN_F

    # Batch tile: whole batch in one grid step when small; capped at max_tb so
    # 2x bf16 x-buffers + bf16 w1 + f32 hidden tile fit v5e's scoped VMEM.
    tb = min(max_tb, _round_up(B, 8))
    B_pad = _round_up(B, tb)
    if B_pad != B:
        x = jnp.pad(x, ((0, B_pad - B), (0, 0)))

    x_bf16 = x.astype(jnp.bfloat16)   # halves x HBM traffic, feeds bf16 MXU

    grid = (B_pad // tb,)
    full = lambda shape: pl.BlockSpec(shape, lambda i: (0, 0))

    out = pl.pallas_call(
        classifier_kernel,
        out_shape=jax.ShapeDtypeStruct((B_pad, OUT_F), jnp.float32),
        grid=grid,
        in_specs=[
            pl.BlockSpec((tb, IN_F), lambda i: (i, 0)),   # x tile over batch
            full((IN_F, HID_F)),                          # folded w1 (bf16)
            full((1, HID_F)),                             # folded b1 (f32)
            full((1, HID_F)),                             # w2 row    (f32)
            full((1, OUT_F)),                             # b2        (f32)
        ],
        out_specs=pl.BlockSpec((tb, OUT_F), lambda i: (i, 0)),
        compiler_params=pltpu.CompilerParams(
            dimension_semantics=("parallel",)),           # megacore batch split
    )(x_bf16, w1f, b1f, w2r, b2f)
    return out[:B]


def init_params(key):
    ks = jax.random.split(key, 8)
    # Linear weights stored as (in, out) == torch weight.T
    w1 = jax.random.normal(ks[0], (IN_F, HID_F), jnp.float32) * (1.0 / IN_F ** 0.5)
    b1 = jax.random.normal(ks[1], (1, HID_F), jnp.float32) * 0.01
    gamma = 1.0 + 0.1 * jax.random.normal(ks[2], (1, HID_F), jnp.float32)
    beta = 0.1 * jax.random.normal(ks[3], (1, HID_F), jnp.float32)
    mean = 0.05 * jax.random.normal(ks[4], (1, HID_F), jnp.float32)
    var = jnp.abs(1.0 + 0.1 * jax.random.normal(ks[5], (1, HID_F), jnp.float32))
    w2 = jax.random.normal(ks[6], (HID_F, OUT_F), jnp.float32) * (1.0 / HID_F ** 0.5)
    b2 = 0.01 * jax.random.normal(ks[7], (1, OUT_F), jnp.float32)
    return (w1, b1, gamma, beta, mean, var, w2, b2)


def reference_forward_f32(x, params):
    """Full-f32 reference with the original (unfolded) module math."""
    w1, b1, gamma, beta, mean, var, w2, b2 = params
    h = x @ w1 + b1
    h = (h - mean) * jax.lax.rsqrt(var + BN_EPS) * gamma + beta
    h = jnp.maximum(h, 0.0)
    return jax.nn.sigmoid(h @ w2 + b2)


def reference_forward_matched(x, folded_params):
    """Reference that mirrors the kernel's precision (bf16 matmul, f32 accum)."""
    w1f, b1f, w2r, b2f = folded_params
    h = jnp.dot(x.astype(jnp.bfloat16), w1f,
                preferred_element_type=jnp.float32) + b1f
    h = jnp.maximum(h, 0.0)
    return jax.nn.sigmoid(jnp.sum(h * w2r, axis=-1, keepdims=True) + b2f)


if __name__ == "__main__":
    key = jax.random.PRNGKey(0)
    kx, kp = jax.random.split(key)

    B = 16
    x = jax.random.normal(kx, (B, IN_F), jnp.float32)
    params = init_params(kp)
    folded = fold_bn_into_linear(params)

    out = classifier_forward(x, folded)
    out = jax.block_until_ready(out)
    assert out.shape == (B, OUT_F)

    # Tight check against a precision-matched reference.
    ref_m = reference_forward_matched(x, folded)
    assert jnp.allclose(out, ref_m, atol=1e-4, rtol=1e-4), "mismatch vs. matched ref"

    # Loose check against the full-f32 module semantics (bf16 MXU rounding).
    ref_f32 = reference_forward_f32(x, params)
    assert jnp.allclose(out, ref_f32, atol=2e-2, rtol=2e-2), "mismatch vs. f32 ref"

    print("KERNEL_OK")
</pallas_src>

<mosaic_0001>
module attributes {stable_mosaic.version = 11 : i64} {
  func.func @classifier_kernel(%arg0: i32, %arg1: memref<16x1664xbf16, #tpu.memory_space<vmem>>, %arg2: memref<1664x416xbf16, #tpu.memory_space<vmem>>, %arg3: memref<1x416xf32, #tpu.memory_space<vmem>>, %arg4: memref<1x416xf32, #tpu.memory_space<vmem>>, %arg5: memref<1x1xf32, #tpu.memory_space<vmem>>, %arg6: memref<16x1xf32, #tpu.memory_space<vmem>>) attributes {dimension_semantics = [#tpu.dimension_semantics<parallel>], iteration_bounds = array<i64: 1>, scalar_prefetch = 0 : i64, scratch_operands = 0 : i64, tpu.core_type = #tpu.core_type<tc>, window_params = [{transform_indices = @transform_0, window_bounds = array<i64: 16, 1664>}, {pipeline_mode = #tpu.pipeline_mode<synchronous>, transform_indices = @transform_1, window_bounds = array<i64: 1664, 416>}, {pipeline_mode = #tpu.pipeline_mode<synchronous>, transform_indices = @transform_2, window_bounds = array<i64: 1, 416>}, {pipeline_mode = #tpu.pipeline_mode<synchronous>, transform_indices = @transform_3, window_bounds = array<i64: 1, 416>}, {pipeline_mode = #tpu.pipeline_mode<synchronous>, transform_indices = @transform_4, window_bounds = array<i64: 1, 1>}, {transform_indices = @transform_5, window_bounds = array<i64: 16, 1>}]} {
    %c0 = arith.constant 0 : index
    %c0_0 = arith.constant 0 : index
    %0 = vector.load %arg1[%c0, %c0_0] : memref<16x1664xbf16, #tpu.memory_space<vmem>>, vector<16x1664xbf16>
    %c0_1 = arith.constant 0 : index
    %c0_2 = arith.constant 0 : index
    %1 = vector.load %arg2[%c0_1, %c0_2] : memref<1664x416xbf16, #tpu.memory_space<vmem>>, vector<1664x416xbf16>
    %cst = arith.constant dense<0.000000e+00> : vector<16x416xf32>
    %2 = tpu.matmul %0, %1, %cst {dimension_numbers = #tpu.dot_dimension_numbers<[1], [0], [0], [1], [0, 0, 1, 1], [], []>} : vector<16x1664xbf16>, vector<1664x416xbf16>, vector<16x416xf32> -> vector<16x416xf32>
    %c0_3 = arith.constant 0 : index
    %c0_4 = arith.constant 0 : index
    %3 = vector.load %arg3[%c0_3, %c0_4] : memref<1x416xf32, #tpu.memory_space<vmem>>, vector<1x416xf32>
    %4 = vector.broadcast %3 : vector<1x416xf32> to vector<16x416xf32>
    %5 = arith.addf %2, %4 : vector<16x416xf32>
    %cst_5 = arith.constant 0.000000e+00 : f32
    %6 = vector.broadcast %cst_5 : f32 to vector<16x416xf32>
    %7 = arith.maximumf %5, %6 : vector<16x416xf32>
    %c0_6 = arith.constant 0 : index
    %c0_7 = arith.constant 0 : index
    %8 = vector.load %arg4[%c0_6, %c0_7] : memref<1x416xf32, #tpu.memory_space<vmem>>, vector<1x416xf32>
    %9 = vector.broadcast %8 : vector<1x416xf32> to vector<16x416xf32>
    %10 = arith.mulf %7, %9 : vector<16x416xf32>
    %cst_8 = arith.constant dense<0.000000e+00> : vector<16xf32>
    %11 = vector.multi_reduction <add>, %10, %cst_8 [1] : vector<16x416xf32> to vector<16xf32>
    %12 = vector.shape_cast %11 : vector<16xf32> to vector<16x1xf32>
    %c0_9 = arith.constant 0 : index
    %c0_10 = arith.constant 0 : index
    %13 = vector.load %arg5[%c0_9, %c0_10] : memref<1x1xf32, #tpu.memory_space<vmem>>, vector<1x1xf32>
    %14 = vector.broadcast %13 : vector<1x1xf32> to vector<16x1xf32>
    %15 = arith.addf %12, %14 : vector<16x1xf32>
    %16 = arith.negf %15 : vector<16x1xf32>
    %17 = math.exp %16 : vector<16x1xf32>
    %cst_11 = arith.constant 1.000000e+00 : f32
    %18 = vector.broadcast %cst_11 : f32 to vector<16x1xf32>
    %19 = arith.addf %18, %17 : vector<16x1xf32>
    %20 = arith.divf %18, %19 : vector<16x1xf32>
    %c0_12 = arith.constant 0 : index
    %c0_13 = arith.constant 0 : index
    %21 = vector.load %arg6[%c0_12, %c0_13] : memref<16x1xf32, #tpu.memory_space<vmem>>, vector<16x1xf32>
    tpu.vector_store %arg6[%c0_12, %c0_13], %20 {strides = array<i32>} : memref<16x1xf32, #tpu.memory_space<vmem>>, vector<16x1xf32>,
    return
  }
  func.func @transform_0(%arg0: i32) -> (i32, i32) {
    %c0_i32 = arith.constant 0 : i32
    %c0_i32_0 = arith.constant 0 : i32
    return %arg0, %c0_i32 : i32, i32
  }
  func.func @transform_1(%arg0: i32) -> (i32, i32) {
    %c0_i32 = arith.constant 0 : i32
    %c0_i32_0 = arith.constant 0 : i32
    %c0_i32_1 = arith.constant 0 : i32
    return %c0_i32, %c0_i32_0 : i32, i32
  }
  func.func @transform_2(%arg0: i32) -> (i32, i32) {
    %c0_i32 = arith.constant 0 : i32
    %c0_i32_0 = arith.constant 0 : i32
    %c0_i32_1 = arith.constant 0 : i32
    return %c0_i32, %c0_i32_0 : i32, i32
  }
  func.func @transform_3(%arg0: i32) -> (i32, i32) {
    %c0_i32 = arith.constant 0 : i32
    %c0_i32_0 = arith.constant 0 : i32
    %c0_i32_1 = arith.constant 0 : i32
    return %c0_i32, %c0_i32_0 : i32, i32
  }
  func.func @transform_4(%arg0: i32) -> (i32, i32) {
    %c0_i32 = arith.constant 0 : i32
    %c0_i32_0 = arith.constant 0 : i32
    %c0_i32_1 = arith.constant 0 : i32
    return %c0_i32, %c0_i32_0 : i32, i32
  }
  func.func @transform_5(%arg0: i32) -> (i32, i32) {
    %c0_i32 = arith.constant 0 : i32
    %c0_i32_0 = arith.constant 0 : i32
    return %arg0, %c0_i32 : i32, i32
  }
}

</mosaic_0001>

<llo_original>
// kernel: tpu_custom_call.1
$region0: #{tpu_custom_call.1}
  #allocation0 [shape = 'u32[]', space=smem, size = 0x4, offset = 0x4, fixed_abs, tag = 'smem constant byte address 0x4 - core index']
  #allocation1 [shape = 'u32[72,128]{1,0:T(1,128)}', space=vmem, size = 0x9000, scoped, tag = 'internal scratch']
  #allocation2 [shape = 'f32[1,1]{1,0:T(1,128)S(1)}', space=vmem, size = 0x200, scoped, tag = 'scoped memory for tpu_custom_call.1']
  %s0 = inlined_call_operand.vmem [shape: bf16[16,1664], index: 0, kind: input, shape index: {}]
  %s1 = inlined_call_operand.vmem [shape: bf16[1664,416], index: 1, kind: input, shape index: {}]
  %s2 = inlined_call_operand.vmem [shape: f32[1,416], index: 2, kind: input, shape index: {}]
  %s3 = inlined_call_operand.vmem [shape: f32[1,416], index: 3, kind: input, shape index: {}]
  %s4 = inlined_call_operand.<no memory space> [shape: f32[1,1], index: 4, kind: input, shape index: {}]
  %s5 = inlined_call_operand.vmem [shape: f32[16,1], index: 5, kind: output, shape index: {}]
  %s6 = sld [smem:[#allocation0]]
  $region30: #{tpu_custom_call.1} parent=0
    _
  %s8 = ssub.s32 1, %s6
  %s9 = scalar_select 0, %s8, %s6
  %v10 = vstv %s4
  %11 = vst [vmem:[#allocation2] sm:$0x1] %v10
  // Predicated region
  $region2: #{tpu_custom_call.1} parent=0 // pred_check
    _
  $region3: #{tpu_custom_call.1} parent=0 // pred_check_branch
    %13 = sbr.rel (0) target = $region5
  $region4: #{tpu_custom_call.1} parent=0 // pred_region
    _
  $region5: #{tpu_custom_call.1} parent=0 // pred_fallthru
    _
  // Predicated region
  $region6: #{tpu_custom_call.1} parent=0 // pred_check
    _
  $region7: #{tpu_custom_call.1} parent=0 // pred_check_branch
    %15 = sbr.rel (0) target = $region9
  $region8: #{tpu_custom_call.1} parent=0 // pred_region
    _
  $region9: #{tpu_custom_call.1} parent=0 // pred_fallthru
    _
  // Predicated region
  $region10: #{tpu_custom_call.1} parent=0 // pred_check
    _
  $region11: #{tpu_custom_call.1} parent=0 // pred_check_branch
    %17 = sbr.rel (0) target = $region13
  $region12: #{tpu_custom_call.1} parent=0 // pred_region
    _
  $region13: #{tpu_custom_call.1} parent=0 // pred_fallthru
    _
  // Predicated region
  $region14: #{tpu_custom_call.1} parent=0 // pred_check
    _
  $region15: #{tpu_custom_call.1} parent=0 // pred_check_branch
    %19 = sbr.rel (0) target = $region17
  $region16: #{tpu_custom_call.1} parent=0 // pred_region
    _
  $region17: #{tpu_custom_call.1} parent=0 // pred_fallthru
    _
  // Predicated region
  $region18: #{tpu_custom_call.1} parent=0 // pred_check
    _
  $region19: #{tpu_custom_call.1} parent=0 // pred_check_branch
    %21 = sbr.rel (0) target = $region21
  $region20: #{tpu_custom_call.1} parent=0 // pred_region
    _
  $region21: #{tpu_custom_call.1} parent=0 // pred_fallthru
    _
  %v22 = vld [vmem:[%s0] sm:$0xff]
  %v23 = vld [vmem:[%s0 + $0x8] sm:$0xff]
  %v24 = vld [vmem:[%s0 + $0x10] sm:$0xff]
  %v25 = vld [vmem:[%s0 + $0x18] sm:$0xff]
  %v26 = vld [vmem:[%s0 + $0x20] sm:$0xff]
  %v27 = vld [vmem:[%s0 + $0x28] sm:$0xff]
  %v28 = vld [vmem:[%s0 + $0x30] sm:$0xf]
  %v29 = vld [vmem:[%s0 + $0x34] sm:$0xff]
  %v30 = vld [vmem:[%s0 + $0x3c] sm:$0xff]
  %v31 = vld [vmem:[%s0 + $0x44] sm:$0xff]
  %v32 = vld [vmem:[%s0 + $0x4c] sm:$0xff]
  %v33 = vld [vmem:[%s0 + $0x54] sm:$0xff]
  %v34 = vld [vmem:[%s0 + $0x5c] sm:$0xff]
  %v35 = vld [vmem:[%s0 + $0x64] sm:$0xf]
  %v36 = vld [vmem:[%s1] sm:$0xff]
  %v37 = vld [vmem:[%s1 + $0x8] sm:$0xff]
  %v38 = vld [vmem:[%s1 + $0x10] sm:$0xff]
  %v39 = vld [vmem:[%s1 + $0x18] sm:$0xff]
  %v40 = vld [vmem:[%s1 + $0x20] sm:$0xff]
  %v41 = vld [vmem:[%s1 + $0x28] sm:$0xff]
  %v42 = vld [vmem:[%s1 + $0x30] sm:$0xff]
  %v43 = vld [vmem:[%s1 + $0x38] sm:$0xff]
  %v44 = vld [vmem:[%s1 + $0x40] sm:$0xff]
  %v45 = vld [vmem:[%s1 + $0x48] sm:$0xff]
  %v46 = vld [vmem:[%s1 + $0x50] sm:$0xff]
  %v47 = vld [vmem:[%s1 + $0x58] sm:$0xff]
  %v48 = vld [vmem:[%s1 + $0x60] sm:$0xff]
  %v49 = vld [vmem:[%s1 + $0x68] sm:$0xff]
  %v50 = vld [vmem:[%s1 + $0x70] sm:$0xff]
  %v51 = vld [vmem:[%s1 + $0x78] sm:$0xff]
  %v52 = vld [vmem:[%s1 + $0x80] sm:$0xff]
  %v53 = vld [vmem:[%s1 + $0x88] sm:$0xff]
  %v54 = vld [vmem:[%s1 + $0x90] sm:$0xff]
  %v55 = vld [vmem:[%s1 + $0x98] sm:$0xff]
  %v56 = vld [vmem:[%s1 + $0xa0] sm:$0xff]
  %v57 = vld [vmem:[%s1 + $0xa8] sm:$0xff]
  %v58 = vld [vmem:[%s1 + $0xb0] sm:$0xff]
  %v59 = vld [vmem:[%s1 + $0xb8] sm:$0xff]
  %v60 = vld [vmem:[%s1 + $0xc0] sm:$0xff]
  %v61 = vld [vmem:[%s1 + $0xc8] sm:$0xff]
  %v62 = vld [vmem:[%s1 + $0xd0] sm:$0xff]
  %v63 = vld [vmem:[%s1 + $0xd8] sm:$0xff]
  %v64 = vld [vmem:[%s1 + $0xe0] sm:$0xff]
  %v65 = vld [vmem:[%s1 + $0xe8] sm:$0xff]
  %v66 = vld [vmem:[%s1 + $0xf0] sm:$0xff]
  %v67 = vld [vmem:[%s1 + $0xf8] sm:$0xff]
  %v68 = vld [vmem:[%s1 + $0x100] sm:$0xff]
  %v69 = vld [vmem:[%s1 + $0x108] sm:$0xff]
  %v70 = vld [vmem:[%s1 + $0x110] sm:$0xff]
  %v71 = vld [vmem:[%s1 + $0x118] sm:$0xff]
  %v72 = vld [vmem:[%s1 + $0x120] sm:$0xff]
  %v73 = vld [vmem:[%s1 + $0x128] sm:$0xff]
  %v74 = vld [vmem:[%s1 + $0x130] sm:$0xff]
  %v75 = vld [vmem:[%s1 + $0x138] sm:$0xff]
  %v76 = vld [vmem:[%s1 + $0x140] sm:$0xff]
  %v77 = vld [vmem:[%s1 + $0x148] sm:$0xff]
  %v78 = vld [vmem:[%s1 + $0x150] sm:$0xff]
  %v79 = vld [vmem:[%s1 + $0x158] sm:$0xff]
  %v80 = vld [vmem:[%s1 + $0x160] sm:$0xff]
  %v81 = vld [vmem:[%s1 + $0x168] sm:$0xff]
  %v82 = vld [vmem:[%s1 + $0x170] sm:$0xff]
  %v83 = vld [vmem:[%s1 + $0x178] sm:$0xff]
  %v84 = vld [vmem:[%s1 + $0x180] sm:$0xff]
  %v85 = vld [vmem:[%s1 + $0x188] sm:$0xff]
  %v86 = vld [vmem:[%s1 + $0x190] sm:$0xff]
  %v87 = vld [vmem:[%s1 + $0x198] sm:$0xff]
  %v88 = vld [vmem:[%s1 + $0x1a0] sm:$0xff]
  %v89 = vld [vmem:[%s1 + $0x1a8] sm:$0xff]
  %v90 = vld [vmem:[%s1 + $0x1b0] sm:$0xff]
  %v91 = vld [vmem:[%s1 + $0x1b8] sm:$0xff]
  %v92 = vld [vmem:[%s1 + $0x1c0] sm:$0xff]
  %v93 = vld [vmem:[%s1 + $0x1c8] sm:$0xff]
  %v94 = vld [vmem:[%s1 + $0x1d0] sm:$0xff]
  %v95 = vld [vmem:[%s1 + $0x1d8] sm:$0xff]
  %v96 = vld [vmem:[%s1 + $0x1e0] sm:$0xff]
  %v97 = vld [vmem:[%s1 + $0x1e8] sm:$0xff]
  %v98 = vld [vmem:[%s1 + $0x1f0] sm:$0xff]
  %v99 = vld [vmem:[%s1 + $0x1f8] sm:$0xff]
  %v100 = vld [vmem:[%s1 + $0x200] sm:$0xff]
  %v101 = vld [vmem:[%s1 + $0x208] sm:$0xff]
  %v102 = vld [vmem:[%s1 + $0x210] sm:$0xff]
  %v103 = vld [vmem:[%s1 + $0x218] sm:$0xff]
  %v104 = vld [vmem:[%s1 + $0x220] sm:$0xff]
  %v105 = vld [vmem:[%s1 + $0x228] sm:$0xff]
  %v106 = vld [vmem:[%s1 + $0x230] sm:$0xff]
  %v107 = vld [vmem:[%s1 + $0x238] sm:$0xff]
  %v108 = vld [vmem:[%s1 + $0x240] sm:$0xff]
  %v109 = vld [vmem:[%s1 + $0x248] sm:$0xff]
  %v110 = vld [vmem:[%s1 + $0x250] sm:$0xff]
  %v111 = vld [vmem:[%s1 + $0x258] sm:$0xff]
  %v112 = vld [vmem:[%s1 + $0x260] sm:$0xff]
  %v113 = vld [vmem:[%s1 + $0x268] sm:$0xff]
  %v114 = vld [vmem:[%s1 + $0x270] sm:$0xff]
  %v115 = vld [vmem:[%s1 + $0x278] sm:$0xff]
  %v116 = vld [vmem:[%s1 + $0x280] sm:$0xff]
  %v117 = vld [vmem:[%s1 + $0x288] sm:$0xff]
  %v118 = vld [vmem:[%s1 + $0x290] sm:$0xff]
  %v119 = vld [vmem:[%s1 + $0x298] sm:$0xff]
  %v120 = vld [vmem:[%s1 + $0x2a0] sm:$0xff]
  %v121 = vld [vmem:[%s1 + $0x2a8] sm:$0xff]
  %v122 = vld [vmem:[%s1 + $0x2b0] sm:$0xff]
  %v123 = vld [vmem:[%s1 + $0x2b8] sm:$0xff]
  %v124 = vld [vmem:[%s1 + $0x2c0] sm:$0xff]
  %v125 = vld [vmem:[%s1 + $0x2c8] sm:$0xff]
  %v126 = vld [vmem:[%s1 + $0x2d0] sm:$0xff]
  %v127 = vld [vmem:[%s1 + $0x2d8] sm:$0xff]
  %v128 = vld [vmem:[%s1 + $0x2e0] sm:$0xff]
  %v129 = vld [vmem:[%s1 + $0x2e8] sm:$0xff]
  %v130 = vld [vmem:[%s1 + $0x2f0] sm:$0xff]
  %v131 = vld [vmem:[%s1 + $0x2f8] sm:$0xff]
  %v132 = vld [vmem:[%s1 + $0x300] sm:$0xff]
  %v133 = vld [vmem:[%s1 + $0x308] sm:$0xff]
  %v134 = vld [vmem:[%s1 + $0x310] sm:$0xff]
  %v135 = vld [vmem:[%s1 + $0x318] sm:$0xff]
  %v136 = vld [vmem:[%s1 + $0x320] sm:$0xff]
  %v137 = vld [vmem:[%s1 + $0x328] sm:$0xff]
  %v138 = vld [vmem:[%s1 + $0x330] sm:$0xff]
  %v139 = vld [vmem:[%s1 + $0x338] sm:$0xff]
  %v140 = vld [vmem:[%s1 + $0x340] sm:$0xff]
  %v141 = vld [vmem:[%s1 + $0x348] sm:$0xff]
  %v142 = vld [vmem:[%s1 + $0x350] sm:$0xff]
  %v143 = vld [vmem:[%s1 + $0x358] sm:$0xff]
  %v144 = vld [vmem:[%s1 + $0x360] sm:$0xff]
  %v145 = vld [vmem:[%s1 + $0x368] sm:$0xff]
  %v146 = vld [vmem:[%s1 + $0x370] sm:$0xff]
  %v147 = vld [vmem:[%s1 + $0x378] sm:$0xff]
  %v148 = vld [vmem:[%s1 + $0x380] sm:$0xff]
  %v149 = vld [vmem:[%s1 + $0x388] sm:$0xff]
  %v150 = vld [vmem:[%s1 + $0x390] sm:$0xff]
  %v151 = vld [vmem:[%s1 + $0x398] sm:$0xff]
  %v152 = vld [vmem:[%s1 + $0x3a0] sm:$0xff]
  %v153 = vld [vmem:[%s1 + $0x3a8] sm:$0xff]
  %v154 = vld [vmem:[%s1 + $0x3b0] sm:$0xff]
  %v155 = vld [vmem:[%s1 + $0x3b8] sm:$0xff]
  %v156 = vld [vmem:[%s1 + $0x3c0] sm:$0xff]
  %v157 = vld [vmem:[%s1 + $0x3c8] sm:$0xff]
  %v158 = vld [vmem:[%s1 + $0x3d0] sm:$0xff]
  %v159 = vld [vmem:[%s1 + $0x3d8] sm:$0xff]
  %v160 = vld [vmem:[%s1 + $0x3e0] sm:$0xff]
  %v161 = vld [vmem:[%s1 + $0x3e8] sm:$0xff]
  %v162 = vld [vmem:[%s1 + $0x3f0] sm:$0xff]
  %v163 = vld [vmem:[%s1 + $0x3f8] sm:$0xff]
  %v164 = vld [vmem:[%s1 + $0x400] sm:$0xff]
  %v165 = vld [vmem:[%s1 + $0x408] sm:$0xff]
  %v166 = vld [vmem:[%s1 + $0x410] sm:$0xff]
  %v167 = vld [vmem:[%s1 + $0x418] sm:$0xff]
  %v168 = vld [vmem:[%s1 + $0x420] sm:$0xff]
  %v169 = vld [vmem:[%s1 + $0x428] sm:$0xff]
  %v170 = vld [vmem:[%s1 + $0x430] sm:$0xff]
  %v171 = vld [vmem:[%s1 + $0x438] sm:$0xff]
  %v172 = vld [vmem:[%s1 + $0x440] sm:$0xff]
  %v173 = vld [vmem:[%s1 + $0x448] sm:$0xff]
  %v174 = vld [vmem:[%s1 + $0x450] sm:$0xff]
  %v175 = vld [vmem:[%s1 + $0x458] sm:$0xff]
  %v176 = vld [vmem:[%s1 + $0x460] sm:$0xff]
  %v177 = vld [vmem:[%s1 + $0x468] sm:$0xff]
  %v178 = vld [vmem:[%s1 + $0x470] sm:$0xff]
  %v179 = vld [vmem:[%s1 + $0x478] sm:$0xff]
  %v180 = vld [vmem:[%s1 + $0x480] sm:$0xff]
  %v181 = vld [vmem:[%s1 + $0x488] sm:$0xff]
  %v182 = vld [vmem:[%s1 + $0x490] sm:$0xff]
  %v183 = vld [vmem:[%s1 + $0x498] sm:$0xff]
  %v184 = vld [vmem:[%s1 + $0x4a0] sm:$0xff]
  %v185 = vld [vmem:[%s1 + $0x4a8] sm:$0xff]
  %v186 = vld [vmem:[%s1 + $0x4b0] sm:$0xff]
  %v187 = vld [vmem:[%s1 + $0x4b8] sm:$0xff]
  %v188 = vld [vmem:[%s1 + $0x4c0] sm:$0xff]
  %v189 = vld [vmem:[%s1 + $0x4c8] sm:$0xff]
  %v190 = vld [vmem:[%s1 + $0x4d0] sm:$0xff]
  %v191 = vld [vmem:[%s1 + $0x4d8] sm:$0xff]
  %v192 = vld [vmem:[%s1 + $0x4e0] sm:$0xff]
  %v193 = vld [vmem:[%s1 + $0x4e8] sm:$0xff]
  %v194 = vld [vmem:[%s1 + $0x4f0] sm:$0xff]
  %v195 = vld [vmem:[%s1 + $0x4f8] sm:$0xff]
  %v196 = vld [vmem:[%s1 + $0x500] sm:$0xff]
  %v197 = vld [vmem:[%s1 + $0x508] sm:$0xff]
  %v198 = vld [vmem:[%s1 + $0x510] sm:$0xff]
  %v199 = vld [vmem:[%s1 + $0x518] sm:$0xff]
  %v200 = vld [vmem:[%s1 + $0x520] sm:$0xff]
  %v201 = vld [vmem:[%s1 + $0x528] sm:$0xff]
  %v202 = vld [vmem:[%s1 + $0x530] sm:$0xff]
  %v203 = vld [vmem:[%s1 + $0x538] sm:$0xff]
  %v204 = vld [vmem:[%s1 + $0x540] sm:$0xff]
  %v205 = vld [vmem:[%s1 + $0x548] sm:$0xff]
  %v206 = vld [vmem:[%s1 + $0x550] sm:$0xff]
  %v207 = vld [vmem:[%s1 + $0x558] sm:$0xff]
  %v208 = vld [vmem:[%s1 + $0x560] sm:$0xff]
  %v209 = vld [vmem:[%s1 + $0x568] sm:$0xff]
  %v210 = vld [vmem:[%s1 + $0x570] sm:$0xff]
  %v211 = vld [vmem:[%s1 + $0x578] sm:$0xff]
  %v212 = vld [vmem:[%s1 + $0x580] sm:$0xff]
  %v213 = vld [vmem:[%s1 + $0x588] sm:$0xff]
  %v214 = vld [vmem:[%s1 + $0x590] sm:$0xff]
  %v215 = vld [vmem:[%s1 + $0x598] sm:$0xff]
  %v216 = vld [vmem:[%s1 + $0x5a0] sm:$0xff]
  %v217 = vld [vmem:[%s1 + $0x5a8] sm:$0xff]
  %v218 = vld [vmem:[%s1 + $0x5b0] sm:$0xff]
  %v219 = vld [vmem:[%s1 + $0x5b8] sm:$0xff]
  %v220 = vld [vmem:[%s1 + $0x5c0] sm:$0xff]
  %v221 = vld [vmem:[%s1 + $0x5c8] sm:$0xff]
  %v222 = vld [vmem:[%s1 + $0x5d0] sm:$0xff]
  %v223 = vld [vmem:[%s1 + $0x5d8] sm:$0xff]
  %v224 = vld [vmem:[%s1 + $0x5e0] sm:$0xff]
  %v225 = vld [vmem:[%s1 + $0x5e8] sm:$0xff]
  %v226 = vld [vmem:[%s1 + $0x5f0] sm:$0xff]
  %v227 = vld [vmem:[%s1 + $0x5f8] sm:$0xff]
  %v228 = vld [vmem:[%s1 + $0x600] sm:$0xff]
  %v229 = vld [vmem:[%s1 + $0x608] sm:$0xff]
  %v230 = vld [vmem:[%s1 + $0x610] sm:$0xff]
  %v231 = vld [vmem:[%s1 + $0x618] sm:$0xff]
  %v232 = vld [vmem:[%s1 + $0x620] sm:$0xff]
  %v233 = vld [vmem:[%s1 + $0x628] sm:$0xff]
  %v234 = vld [vmem:[%s1 + $0x630] sm:$0xff]
  %v235 = vld [vmem:[%s1 + $0x638] sm:$0xff]
  %v236 = vld [vmem:[%s1 + $0x640] sm:$0xff]
  %v237 = vld [vmem:[%s1 + $0x648] sm:$0xff]
  %v238 = vld [vmem:[%s1 + $0x650] sm:$0xff]
  %v239 = vld [vmem:[%s1 + $0x658] sm:$0xff]
  %v240 = vld [vmem:[%s1 + $0x660] sm:$0xff]
  %v241 = vld [vmem:[%s1 + $0x668] sm:$0xff]
  %v242 = vld [vmem:[%s1 + $0x670] sm:$0xff]
  %v243 = vld [vmem:[%s1 + $0x678] sm:$0xff]
  %v244 = vld [vmem:[%s1 + $0x680] sm:$0xff]
  %v245 = vld [vmem:[%s1 + $0x688] sm:$0xff]
  %v246 = vld [vmem:[%s1 + $0x690] sm:$0xff]
  %v247 = vld [vmem:[%s1 + $0x698] sm:$0xff]
  %v248 = vld [vmem:[%s1 + $0x6a0] sm:$0xff]
  %v249 = vld [vmem:[%s1 + $0x6a8] sm:$0xff]
  %v250 = vld [vmem:[%s1 + $0x6b0] sm:$0xff]
  %v251 = vld [vmem:[%s1 + $0x6b8] sm:$0xff]
  %v252 = vld [vmem:[%s1 + $0x6c0] sm:$0xff]
  %v253 = vld [vmem:[%s1 + $0x6c8] sm:$0xff]
  %v254 = vld [vmem:[%s1 + $0x6d0] sm:$0xff]
  %v255 = vld [vmem:[%s1 + $0x6d8] sm:$0xff]
  %v256 = vld [vmem:[%s1 + $0x6e0] sm:$0xff]
  %v257 = vld [vmem:[%s1 + $0x6e8] sm:$0xff]
  %v258 = vld [vmem:[%s1 + $0x6f0] sm:$0xff]
  %v259 = vld [vmem:[%s1 + $0x6f8] sm:$0xff]
  %v260 = vld [vmem:[%s1 + $0x700] sm:$0xff]
  %v261 = vld [vmem:[%s1 + $0x708] sm:$0xff]
  %v262 = vld [vmem:[%s1 + $0x710] sm:$0xff]
  %v263 = vld [vmem:[%s1 + $0x718] sm:$0xff]
  %v264 = vld [vmem:[%s1 + $0x720] sm:$0xff]
  %v265 = vld [vmem:[%s1 + $0x728] sm:$0xff]
  %v266 = vld [vmem:[%s1 + $0x730] sm:$0xff]
  %v267 = vld [vmem:[%s1 + $0x738] sm:$0xff]
  %v268 = vld [vmem:[%s1 + $0x740] sm:$0xff]
  %v269 = vld [vmem:[%s1 + $0x748] sm:$0xff]
  %v270 = vld [vmem:[%s1 + $0x750] sm:$0xff]
  %v271 = vld [vmem:[%s1 + $0x758] sm:$0xff]
  %v272 = vld [vmem:[%s1 + $0x760] sm:$0xff]
  %v273 = vld [vmem:[%s1 + $0x768] sm:$0xff]
  %v274 = vld [vmem:[%s1 + $0x770] sm:$0xff]
  %v275 = vld [vmem:[%s1 + $0x778] sm:$0xff]
  %v276 = vld [vmem:[%s1 + $0x780] sm:$0xff]
  %v277 = vld [vmem:[%s1 + $0x788] sm:$0xff]
  %v278 = vld [vmem:[%s1 + $0x790] sm:$0xff]
  %v279 = vld [vmem:[%s1 + $0x798] sm:$0xff]
  %v280 = vld [vmem:[%s1 + $0x7a0] sm:$0xff]
  %v281 = vld [vmem:[%s1 + $0x7a8] sm:$0xff]
  %v282 = vld [vmem:[%s1 + $0x7b0] sm:$0xff]
  %v283 = vld [vmem:[%s1 + $0x7b8] sm:$0xff]
  %v284 = vld [vmem:[%s1 + $0x7c0] sm:$0xff]
  %v285 = vld [vmem:[%s1 + $0x7c8] sm:$0xff]
  %v286 = vld [vmem:[%s1 + $0x7d0] sm:$0xff]
  %v287 = vld [vmem:[%s1 + $0x7d8] sm:$0xff]
  %v288 = vld [vmem:[%s1 + $0x7e0] sm:$0xff]
  %v289 = vld [vmem:[%s1 + $0x7e8] sm:$0xff]
  %v290 = vld [vmem:[%s1 + $0x7f0] sm:$0xff]
  %v291 = vld [vmem:[%s1 + $0x7f8] sm:$0xff]
  %v292 = vld [vmem:[%s1 + $0x800] sm:$0xff]
  %v293 = vld [vmem:[%s1 + $0x808] sm:$0xff]
  %v294 = vld [vmem:[%s1 + $0x810] sm:$0xff]
  %v295 = vld [vmem:[%s1 + $0x818] sm:$0xff]
  %v296 = vld [vmem:[%s1 + $0x820] sm:$0xff]
  %v297 = vld [vmem:[%s1 + $0x828] sm:$0xff]
  %v298 = vld [vmem:[%s1 + $0x830] sm:$0xff]
  %v299 = vld [vmem:[%s1 + $0x838] sm:$0xff]
  %v300 = vld [vmem:[%s1 + $0x840] sm:$0xff]
  %v301 = vld [vmem:[%s1 + $0x848] sm:$0xff]
  %v302 = vld [vmem:[%s1 + $0x850] sm:$0xff]
  %v303 = vld [vmem:[%s1 + $0x858] sm:$0xff]
  %v304 = vld [vmem:[%s1 + $0x860] sm:$0xff]
  %v305 = vld [vmem:[%s1 + $0x868] sm:$0xff]
  %v306 = vld [vmem:[%s1 + $0x870] sm:$0xff]
  %v307 = vld [vmem:[%s1 + $0x878] sm:$0xff]
  %v308 = vld [vmem:[%s1 + $0x880] sm:$0xff]
  %v309 = vld [vmem:[%s1 + $0x888] sm:$0xff]
  %v310 = vld [vmem:[%s1 + $0x890] sm:$0xff]
  %v311 = vld [vmem:[%s1 + $0x898] sm:$0xff]
  %v312 = vld [vmem:[%s1 + $0x8a0] sm:$0xff]
  %v313 = vld [vmem:[%s1 + $0x8a8] sm:$0xff]
  %v314 = vld [vmem:[%s1 + $0x8b0] sm:$0xff]
  %v315 = vld [vmem:[%s1 + $0x8b8] sm:$0xff]
  %v316 = vld [vmem:[%s1 + $0x8c0] sm:$0xff]
  %v317 = vld [vmem:[%s1 + $0x8c8] sm:$0xff]
  %v318 = vld [vmem:[%s1 + $0x8d0] sm:$0xff]
  %v319 = vld [vmem:[%s1 + $0x8d8] sm:$0xff]
  %v320 = vld [vmem:[%s1 + $0x8e0] sm:$0xff]
  %v321 = vld [vmem:[%s1 + $0x8e8] sm:$0xff]
  %v322 = vld [vmem:[%s1 + $0x8f0] sm:$0xff]
  %v323 = vld [vmem:[%s1 + $0x8f8] sm:$0xff]
  %v324 = vld [vmem:[%s1 + $0x900] sm:$0xff]
  %v325 = vld [vmem:[%s1 + $0x908] sm:$0xff]
  %v326 = vld [vmem:[%s1 + $0x910] sm:$0xff]
  %v327 = vld [vmem:[%s1 + $0x918] sm:$0xff]
  %v328 = vld [vmem:[%s1 + $0x920] sm:$0xff]
  %v329 = vld [vmem:[%s1 + $0x928] sm:$0xff]
  %v330 = vld [vmem:[%s1 + $0x930] sm:$0xff]
  %v331 = vld [vmem:[%s1 + $0x938] sm:$0xff]
  %v332 = vld [vmem:[%s1 + $0x940] sm:$0xff]
  %v333 = vld [vmem:[%s1 + $0x948] sm:$0xff]
  %v334 = vld [vmem:[%s1 + $0x950] sm:$0xff]
  %v335 = vld [vmem:[%s1 + $0x958] sm:$0xff]
  %v336 = vld [vmem:[%s1 + $0x960] sm:$0xff]
  %v337 = vld [vmem:[%s1 + $0x968] sm:$0xff]
  %v338 = vld [vmem:[%s1 + $0x970] sm:$0xff]
  %v339 = vld [vmem:[%s1 + $0x978] sm:$0xff]
  %v340 = vld [vmem:[%s1 + $0x980] sm:$0xff]
  %v341 = vld [vmem:[%s1 + $0x988] sm:$0xff]
  %v342 = vld [vmem:[%s1 + $0x990] sm:$0xff]
  %v343 = vld [vmem:[%s1 + $0x998] sm:$0xff]
  %v344 = vld [vmem:[%s1 + $0x9a0] sm:$0xff]
  %v345 = vld [vmem:[%s1 + $0x9a8] sm:$0xff]
  %v346 = vld [vmem:[%s1 + $0x9b0] sm:$0xff]
  %v347 = vld [vmem:[%s1 + $0x9b8] sm:$0xff]
  %v348 = vld [vmem:[%s1 + $0x9c0] sm:$0xff]
  %v349 = vld [vmem:[%s1 + $0x9c8] sm:$0xff]
  %v350 = vld [vmem:[%s1 + $0x9d0] sm:$0xff]
  %v351 = vld [vmem:[%s1 + $0x9d8] sm:$0xff]
  %v352 = vld [vmem:[%s1 + $0x9e0] sm:$0xff]
  %v353 = vld [vmem:[%s1 + $0x9e8] sm:$0xff]
  %v354 = vld [vmem:[%s1 + $0x9f0] sm:$0xff]
  %v355 = vld [vmem:[%s1 + $0x9f8] sm:$0xff]
  %v356 = vld [vmem:[%s1 + $0xa00] sm:$0xff]
  %v357 = vld [vmem:[%s1 + $0xa08] sm:$0xff]
  %v358 = vld [vmem:[%s1 + $0xa10] sm:$0xff]
  %v359 = vld [vmem:[%s1 + $0xa18] sm:$0xff]
  %v360 = vld [vmem:[%s1 + $0xa20] sm:$0xff]
  %v361 = vld [vmem:[%s1 + $0xa28] sm:$0xff]
  %v362 = vld [vmem:[%s1 + $0xa30] sm:$0xff]
  %v363 = vld [vmem:[%s1 + $0xa38] sm:$0xff]
  %v364 = vld [vmem:[%s1 + $0xa40] sm:$0xff]
  %v365 = vld [vmem:[%s1 + $0xa48] sm:$0xff]
  %v366 = vld [vmem:[%s1 + $0xa50] sm:$0xff]
  %v367 = vld [vmem:[%s1 + $0xa58] sm:$0xff]
  %v368 = vld [vmem:[%s1 + $0xa60] sm:$0xff]
  %v369 = vld [vmem:[%s1 + $0xa68] sm:$0xff]
  %v370 = vld [vmem:[%s1 + $0xa70] sm:$0xff]
  %v371 = vld [vmem:[%s1 + $0xa78] sm:$0xff]
  %v372 = vld [vmem:[%s1 + $0xa80] sm:$0xff]
  %v373 = vld [vmem:[%s1 + $0xa88] sm:$0xff]
  %v374 = vld [vmem:[%s1 + $0xa90] sm:$0xff]
  %v375 = vld [vmem:[%s1 + $0xa98] sm:$0xff]
  %v376 = vld [vmem:[%s1 + $0xaa0] sm:$0xff]
  %v377 = vld [vmem:[%s1 + $0xaa8] sm:$0xff]
  %v378 = vld [vmem:[%s1 + $0xab0] sm:$0xff]
  %v379 = vld [vmem:[%s1 + $0xab8] sm:$0xff]
  %v380 = vld [vmem:[%s1 + $0xac0] sm:$0xff]
  %v381 = vld [vmem:[%s1 + $0xac8] sm:$0xff]
  %v382 = vld [vmem:[%s1 + $0xad0] sm:$0xff]
  %v383 = vld [vmem:[%s1 + $0xad8] sm:$0xff]
  %v384 = vld [vmem:[%s1 + $0xae0] sm:$0xff]
  %v385 = vld [vmem:[%s1 + $0xae8] sm:$0xff]
  %v386 = vld [vmem:[%s1 + $0xaf0] sm:$0xff]
  %v387 = vld [vmem:[%s1 + $0xaf8] sm:$0xff]
  %v388 = vld [vmem:[%s1 + $0xb00] sm:$0xff]
  %v389 = vld [vmem:[%s1 + $0xb08] sm:$0xff]
  %v390 = vld [vmem:[%s1 + $0xb10] sm:$0xff]
  %v391 = vld [vmem:[%s1 + $0xb18] sm:$0xff]
  %v392 = vld [vmem:[%s1 + $0xb20] sm:$0xff]
  %v393 = vld [vmem:[%s1 + $0xb28] sm:$0xff]
  %v394 = vld [vmem:[%s1 + $0xb30] sm:$0xff]
  %v395 = vld [vmem:[%s1 + $0xb38] sm:$0xff]
  %v396 = vld [vmem:[%s1 + $0xb40] sm:$0xff]
  %v397 = vld [vmem:[%s1 + $0xb48] sm:$0xff]
  %v398 = vld [vmem:[%s1 + $0xb50] sm:$0xff]
  %v399 = vld [vmem:[%s1 + $0xb58] sm:$0xff]
  %v400 = vld [vmem:[%s1 + $0xb60] sm:$0xff]
  %v401 = vld [vmem:[%s1 + $0xb68] sm:$0xff]
  %v402 = vld [vmem:[%s1 + $0xb70] sm:$0xff]
  %v403 = vld [vmem:[%s1 + $0xb78] sm:$0xff]
  %v404 = vld [vmem:[%s1 + $0xb80] sm:$0xff]
  %v405 = vld [vmem:[%s1 + $0xb88] sm:$0xff]
  %v406 = vld [vmem:[%s1 + $0xb90] sm:$0xff]
  %v407 = vld [vmem:[%s1 + $0xb98] sm:$0xff]
  %v408 = vld [vmem:[%s1 + $0xba0] sm:$0xff]
  %v409 = vld [vmem:[%s1 + $0xba8] sm:$0xff]
  %v410 = vld [vmem:[%s1 + $0xbb0] sm:$0xff]
  %v411 = vld [vmem:[%s1 + $0xbb8] sm:$0xff]
  %v412 = vld [vmem:[%s1 + $0xbc0] sm:$0xff]
  %v413 = vld [vmem:[%s1 + $0xbc8] sm:$0xff]
  %v414 = vld [vmem:[%s1 + $0xbd0] sm:$0xff]
  %v415 = vld [vmem:[%s1 + $0xbd8] sm:$0xff]
  %v416 = vld [vmem:[%s1 + $0xbe0] sm:$0xff]
  %v417 = vld [vmem:[%s1 + $0xbe8] sm:$0xff]
  %v418 = vld [vmem:[%s1 + $0xbf0] sm:$0xff]
  %v419 = vld [vmem:[%s1 + $0xbf8] sm:$0xff]
  %v420 = vld [vmem:[%s1 + $0xc00] sm:$0xff]
  %v421 = vld [vmem:[%s1 + $0xc08] sm:$0xff]
  %v422 = vld [vmem:[%s1 + $0xc10] sm:$0xff]
  %v423 = vld [vmem:[%s1 + $0xc18] sm:$0xff]
  %v424 = vld [vmem:[%s1 + $0xc20] sm:$0xff]
  %v425 = vld [vmem:[%s1 + $0xc28] sm:$0xff]
  %v426 = vld [vmem:[%s1 + $0xc30] sm:$0xff]
  %v427 = vld [vmem:[%s1 + $0xc38] sm:$0xff]
  %v428 = vld [vmem:[%s1 + $0xc40] sm:$0xff]
  %v429 = vld [vmem:[%s1 + $0xc48] sm:$0xff]
  %v430 = vld [vmem:[%s1 + $0xc50] sm:$0xff]
  %v431 = vld [vmem:[%s1 + $0xc58] sm:$0xff]
  %v432 = vld [vmem:[%s1 + $0xc60] sm:$0xff]
  %v433 = vld [vmem:[%s1 + $0xc68] sm:$0xff]
  %v434 = vld [vmem:[%s1 + $0xc70] sm:$0xff]
  %v435 = vld [vmem:[%s1 + $0xc78] sm:$0xff]
  %v436 = vld [vmem:[%s1 + $0xc80] sm:$0xff]
  %v437 = vld [vmem:[%s1 + $0xc88] sm:$0xff]
  %v438 = vld [vmem:[%s1 + $0xc90] sm:$0xff]
  %v439 = vld [vmem:[%s1 + $0xc98] sm:$0xff]
  %v440 = vld [vmem:[%s1 + $0xca0] sm:$0xff]
  %v441 = vld [vmem:[%s1 + $0xca8] sm:$0xff]
  %v442 = vld [vmem:[%s1 + $0xcb0] sm:$0xff]
  %v443 = vld [vmem:[%s1 + $0xcb8] sm:$0xff]
  %v444 = vld [vmem:[%s1 + $0xcc0] sm:$0xff]
  %v445 = vld [vmem:[%s1 + $0xcc8] sm:$0xff]
  %v446 = vld [vmem:[%s1 + $0xcd0] sm:$0xff]
  %v447 = vld [vmem:[%s1 + $0xcd8] sm:$0xff]
  %v448 = vld [vmem:[%s1 + $0xce0] sm:$0xff]
  %v449 = vld [vmem:[%s1 + $0xce8] sm:$0xff]
  %v450 = vld [vmem:[%s1 + $0xcf0] sm:$0xff]
  %v451 = vld [vmem:[%s1 + $0xcf8] sm:$0xff]
  %v452 = vld [vmem:[%s2] sm:$0xf]
  %v454 = vperm.slane %v452, 0
  %v455 = vperm.slane %v452, 1
  %v456 = vperm.slane %v452, 2
  %v457 = vperm.slane %v452, 3
  %v476 = vunpack.c.l.b16 %v22
  %v477 = vunpack.c.h.b16 %v22
  %v478 = vunpack.c.l.b16 %v23
  %v479 = vunpack.c.h.b16 %v23
  %v480 = vunpack.c.l.b16 %v24
  %v481 = vunpack.c.h.b16 %v24
  %v482 = vunpack.c.l.b16 %v25
  %v483 = vunpack.c.h.b16 %v25
  %v484 = vunpack.c.l.b16 %v26
  %v485 = vunpack.c.h.b16 %v26
  %v486 = vunpack.c.l.b16 %v27
  %v487 = vunpack.c.h.b16 %v27
  %v488 = vunpack.c.l.b16 %v28
  %v489 = vunpack.c.l.b16 %v29
  %v490 = vunpack.c.h.b16 %v29
  %v491 = vunpack.c.l.b16 %v30
  %v492 = vunpack.c.h.b16 %v30
  %v493 = vunpack.c.l.b16 %v31
  %v494 = vunpack.c.h.b16 %v31
  %v495 = vunpack.c.l.b16 %v32
  %v496 = vunpack.c.h.b16 %v32
  %v497 = vunpack.c.l.b16 %v33
  %v498 = vunpack.c.h.b16 %v33
  %v499 = vunpack.c.l.b16 %v34
  %v500 = vunpack.c.h.b16 %v34
  %v501 = vunpack.c.l.b16 %v35
  %v502 = vpack.c.b16 %v489, %v476
  %v503 = vpack.c.b16 %v490, %v477
  %v504 = vpack.c.b16 %v491, %v478
  %v505 = vpack.c.b16 %v492, %v479
  %v506 = vpack.c.b16 %v493, %v480
  %v507 = vpack.c.b16 %v494, %v481
  %v508 = vpack.c.b16 %v495, %v482
  %v509 = vpack.c.b16 %v496, %v483
  %v510 = vpack.c.b16 %v497, %v484
  %v511 = vpack.c.b16 %v498, %v485
  %v512 = vpack.c.b16 %v499, %v486
  %v513 = vpack.c.b16 %v500, %v487
  %v514 = vpack.c.b16 %v501, %v488
  %v944 = vunpack.c.l.b16 %v36
  %v945 = vunpack.c.h.b16 %v36
  %v946 = vunpack.c.l.b16 %v37
  %v947 = vunpack.c.h.b16 %v37
  %v948 = vunpack.c.l.b16 %v38
  %v949 = vunpack.c.h.b16 %v38
  %v950 = vunpack.c.l.b16 %v39
  %v951 = vunpack.c.h.b16 %v39
  %v952 = vunpack.c.l.b16 %v40
  %v953 = vunpack.c.h.b16 %v40
  %v954 = vunpack.c.l.b16 %v41
  %v955 = vunpack.c.h.b16 %v41
  %v956 = vunpack.c.l.b16 %v42
  %v957 = vunpack.c.h.b16 %v42
  %v958 = vunpack.c.l.b16 %v43
  %v959 = vunpack.c.h.b16 %v43
  %v960 = vunpack.c.l.b16 %v44
  %v961 = vunpack.c.h.b16 %v44
  %v962 = vunpack.c.l.b16 %v45
  %v963 = vunpack.c.h.b16 %v45
  %v964 = vunpack.c.l.b16 %v46
  %v965 = vunpack.c.h.b16 %v46
  %v966 = vunpack.c.l.b16 %v47
  %v967 = vunpack.c.h.b16 %v47
  %v968 = vunpack.c.l.b16 %v48
  %v969 = vunpack.c.h.b16 %v48
  %v970 = vunpack.c.l.b16 %v49
  %v971 = vunpack.c.h.b16 %v49
  %v972 = vunpack.c.l.b16 %v50
  %v973 = vunpack.c.h.b16 %v50
  %v974 = vunpack.c.l.b16 %v51
  %v975 = vunpack.c.h.b16 %v51
  %v976 = vunpack.c.l.b16 %v52
  %v977 = vunpack.c.h.b16 %v52
  %v978 = vunpack.c.l.b16 %v53
  %v979 = vunpack.c.h.b16 %v53
  %v980 = vunpack.c.l.b16 %v54
  %v981 = vunpack.c.h.b16 %v54
  %v982 = vunpack.c.l.b16 %v55
  %v983 = vunpack.c.h.b16 %v55
  %v984 = vunpack.c.l.b16 %v56
  %v985 = vunpack.c.h.b16 %v56
  %v986 = vunpack.c.l.b16 %v57
  %v987 = vunpack.c.h.b16 %v57
  %v988 = vunpack.c.l.b16 %v58
  %v989 = vunpack.c.h.b16 %v58
  %v990 = vunpack.c.l.b16 %v59
  %v991 = vunpack.c.h.b16 %v59
  %v992 = vunpack.c.l.b16 %v60
  %v993 = vunpack.c.h.b16 %v60
  %v994 = vunpack.c.l.b16 %v61
  %v995 = vunpack.c.h.b16 %v61
  %v996 = vunpack.c.l.b16 %v62
  %v997 = vunpack.c.h.b16 %v62
  %v998 = vunpack.c.l.b16 %v63
  %v999 = vunpack.c.h.b16 %v63
  %v1000 = vunpack.c.l.b16 %v64
  %v1001 = vunpack.c.h.b16 %v64
  %v1002 = vunpack.c.l.b16 %v65
  %v1003 = vunpack.c.h.b16 %v65
  %v1004 = vunpack.c.l.b16 %v66
  %v1005 = vunpack.c.h.b16 %v66
  %v1006 = vunpack.c.l.b16 %v67
  %v1007 = vunpack.c.h.b16 %v67
  %v1008 = vunpack.c.l.b16 %v68
  %v1009 = vunpack.c.h.b16 %v68
  %v1010 = vunpack.c.l.b16 %v69
  %v1011 = vunpack.c.h.b16 %v69
  %v1012 = vunpack.c.l.b16 %v70
  %v1013 = vunpack.c.h.b16 %v70
  %v1014 = vunpack.c.l.b16 %v71
  %v1015 = vunpack.c.h.b16 %v71
  %v1016 = vunpack.c.l.b16 %v72
  %v1017 = vunpack.c.h.b16 %v72
  %v1018 = vunpack.c.l.b16 %v73
  %v1019 = vunpack.c.h.b16 %v73
  %v1020 = vunpack.c.l.b16 %v74
  %v1021 = vunpack.c.h.b16 %v74
  %v1022 = vunpack.c.l.b16 %v75
  %v1023 = vunpack.c.h.b16 %v75
  %v1024 = vunpack.c.l.b16 %v76
  %v1025 = vunpack.c.h.b16 %v76
  %v1026 = vunpack.c.l.b16 %v77
  %v1027 = vunpack.c.h.b16 %v77
  %v1028 = vunpack.c.l.b16 %v78
  %v1029 = vunpack.c.h.b16 %v78
  %v1030 = vunpack.c.l.b16 %v79
  %v1031 = vunpack.c.h.b16 %v79
  %v1032 = vunpack.c.l.b16 %v80
  %v1033 = vunpack.c.h.b16 %v80
  %v1034 = vunpack.c.l.b16 %v81
  %v1035 = vunpack.c.h.b16 %v81
  %v1036 = vunpack.c.l.b16 %v82
  %v1037 = vunpack.c.h.b16 %v82
  %v1038 = vunpack.c.l.b16 %v83
  %v1039 = vunpack.c.h.b16 %v83
  %v1040 = vunpack.c.l.b16 %v84
  %v1041 = vunpack.c.h.b16 %v84
  %v1042 = vunpack.c.l.b16 %v85
  %v1043 = vunpack.c.h.b16 %v85
  %v1044 = vunpack.c.l.b16 %v86
  %v1045 = vunpack.c.h.b16 %v86
  %v1046 = vunpack.c.l.b16 %v87
  %v1047 = vunpack.c.h.b16 %v87
  %v1048 = vunpack.c.l.b16 %v88
  %v1049 = vunpack.c.h.b16 %v88
  %v1050 = vunpack.c.l.b16 %v89
  %v1051 = vunpack.c.h.b16 %v89
  %v1052 = vunpack.c.l.b16 %v90
  %v1053 = vunpack.c.h.b16 %v90
  %v1054 = vunpack.c.l.b16 %v91
  %v1055 = vunpack.c.h.b16 %v91
  %v1056 = vunpack.c.l.b16 %v92
  %v1057 = vunpack.c.h.b16 %v92
  %v1058 = vunpack.c.l.b16 %v93
  %v1059 = vunpack.c.h.b16 %v93
  %v1060 = vunpack.c.l.b16 %v94
  %v1061 = vunpack.c.h.b16 %v94
  %v1062 = vunpack.c.l.b16 %v95
  %v1063 = vunpack.c.h.b16 %v95
  %v1064 = vunpack.c.l.b16 %v96
  %v1065 = vunpack.c.h.b16 %v96
  %v1066 = vunpack.c.l.b16 %v97
  %v1067 = vunpack.c.h.b16 %v97
  %v1068 = vunpack.c.l.b16 %v98
  %v1069 = vunpack.c.h.b16 %v98
  %v1070 = vunpack.c.l.b16 %v99
  %v1071 = vunpack.c.h.b16 %v99
  %v1072 = vunpack.c.l.b16 %v100
  %v1073 = vunpack.c.h.b16 %v100
  %v1074 = vunpack.c.l.b16 %v101
  %v1075 = vunpack.c.h.b16 %v101
  %v1076 = vunpack.c.l.b16 %v102
  %v1077 = vunpack.c.h.b16 %v102
  %v1078 = vunpack.c.l.b16 %v103
  %v1079 = vunpack.c.h.b16 %v103
  %v1080 = vunpack.c.l.b16 %v104
  %v1081 = vunpack.c.h.b16 %v104
  %v1082 = vunpack.c.l.b16 %v105
  %v1083 = vunpack.c.h.b16 %v105
  %v1084 = vunpack.c.l.b16 %v106
  %v1085 = vunpack.c.h.b16 %v106
  %v1086 = vunpack.c.l.b16 %v107
  %v1087 = vunpack.c.h.b16 %v107
  %v1088 = vunpack.c.l.b16 %v108
  %v1089 = vunpack.c.h.b16 %v108
  %v1090 = vunpack.c.l.b16 %v109
  %v1091 = vunpack.c.h.b16 %v109
  %v1092 = vunpack.c.l.b16 %v110
  %v1093 = vunpack.c.h.b16 %v110
  %v1094 = vunpack.c.l.b16 %v111
  %v1095 = vunpack.c.h.b16 %v111
  %v1096 = vunpack.c.l.b16 %v112
  %v1097 = vunpack.c.h.b16 %v112
  %v1098 = vunpack.c.l.b16 %v113
  %v1099 = vunpack.c.h.b16 %v113
  %v1100 = vunpack.c.l.b16 %v114
  %v1101 = vunpack.c.h.b16 %v114
  %v1102 = vunpack.c.l.b16 %v115
  %v1103 = vunpack.c.h.b16 %v115
  %v1104 = vunpack.c.l.b16 %v116
  %v1105 = vunpack.c.h.b16 %v116
  %v1106 = vunpack.c.l.b16 %v117
  %v1107 = vunpack.c.h.b16 %v117
  %v1108 = vunpack.c.l.b16 %v118
  %v1109 = vunpack.c.h.b16 %v118
  %v1110 = vunpack.c.l.b16 %v119
  %v1111 = vunpack.c.h.b16 %v119
  %v1112 = vunpack.c.l.b16 %v120
  %v1113 = vunpack.c.h.b16 %v120
  %v1114 = vunpack.c.l.b16 %v121
  %v1115 = vunpack.c.h.b16 %v121
  %v1116 = vunpack.c.l.b16 %v122
  %v1117 = vunpack.c.h.b16 %v122
  %v1118 = vunpack.c.l.b16 %v123
  %v1119 = vunpack.c.h.b16 %v123
  %v1120 = vunpack.c.l.b16 %v124
  %v1121 = vunpack.c.h.b16 %v124
  %v1122 = vunpack.c.l.b16 %v125
  %v1123 = vunpack.c.h.b16 %v125
  %v1124 = vunpack.c.l.b16 %v126
  %v1125 = vunpack.c.h.b16 %v126
  %v1126 = vunpack.c.l.b16 %v127
  %v1127 = vunpack.c.h.b16 %v127
  %v1128 = vunpack.c.l.b16 %v128
  %v1129 = vunpack.c.h.b16 %v128
  %v1130 = vunpack.c.l.b16 %v129
  %v1131 = vunpack.c.h.b16 %v129
  %v1132 = vunpack.c.l.b16 %v130
  %v1133 = vunpack.c.h.b16 %v130
  %v1134 = vunpack.c.l.b16 %v131
  %v1135 = vunpack.c.h.b16 %v131
  %v1136 = vunpack.c.l.b16 %v132
  %v1137 = vunpack.c.h.b16 %v132
  %v1138 = vunpack.c.l.b16 %v133
  %v1139 = vunpack.c.h.b16 %v133
  %v1140 = vunpack.c.l.b16 %v134
  %v1141 = vunpack.c.h.b16 %v134
  %v1142 = vunpack.c.l.b16 %v135
  %v1143 = vunpack.c.h.b16 %v135
  %v1144 = vunpack.c.l.b16 %v136
  %v1145 = vunpack.c.h.b16 %v136
  %v1146 = vunpack.c.l.b16 %v137
  %v1147 = vunpack.c.h.b16 %v137
  %v1148 = vunpack.c.l.b16 %v138
  %v1149 = vunpack.c.h.b16 %v138
  %v1150 = vunpack.c.l.b16 %v139
  %v1151 = vunpack.c.h.b16 %v139
  %v1152 = vunpack.c.l.b16 %v140
  %v1153 = vunpack.c.h.b16 %v140
  %v1154 = vunpack.c.l.b16 %v141
  %v1155 = vunpack.c.h.b16 %v141
  %v1156 = vunpack.c.l.b16 %v142
  %v1157 = vunpack.c.h.b16 %v142
  %v1158 = vunpack.c.l.b16 %v143
  %v1159 = vunpack.c.h.b16 %v143
  %v1160 = vunpack.c.l.b16 %v144
  %v1161 = vunpack.c.h.b16 %v144
  %v1162 = vunpack.c.l.b16 %v145
  %v1163 = vunpack.c.h.b16 %v145
  %v1164 = vunpack.c.l.b16 %v146
  %v1165 = vunpack.c.h.b16 %v146
  %v1166 = vunpack.c.l.b16 %v147
  %v1167 = vunpack.c.h.b16 %v147
  %v1168 = vunpack.c.l.b16 %v148
  %v1169 = vunpack.c.h.b16 %v148
  %v1170 = vunpack.c.l.b16 %v149
  %v1171 = vunpack.c.h.b16 %v149
  %v1172 = vunpack.c.l.b16 %v150
  %v1173 = vunpack.c.h.b16 %v150
  %v1174 = vunpack.c.l.b16 %v151
  %v1175 = vunpack.c.h.b16 %v151
  %v1176 = vunpack.c.l.b16 %v152
  %v1177 = vunpack.c.h.b16 %v152
  %v1178 = vunpack.c.l.b16 %v153
  %v1179 = vunpack.c.h.b16 %v153
  %v1180 = vunpack.c.l.b16 %v154
  %v1181 = vunpack.c.h.b16 %v154
  %v1182 = vunpack.c.l.b16 %v155
  %v1183 = vunpack.c.h.b16 %v155
  %v1184 = vunpack.c.l.b16 %v156
  %v1185 = vunpack.c.h.b16 %v156
  %v1186 = vunpack.c.l.b16 %v157
  %v1187 = vunpack.c.h.b16 %v157
  %v1188 = vunpack.c.l.b16 %v158
  %v1189 = vunpack.c.h.b16 %v158
  %v1190 = vunpack.c.l.b16 %v159
  %v1191 = vunpack.c.h.b16 %v159
  %v1192 = vunpack.c.l.b16 %v160
  %v1193 = vunpack.c.h.b16 %v160
  %v1194 = vunpack.c.l.b16 %v161
  %v1195 = vunpack.c.h.b16 %v161
  %v1196 = vunpack.c.l.b16 %v162
  %v1197 = vunpack.c.h.b16 %v162
  %v1198 = vunpack.c.l.b16 %v163
  %v1199 = vunpack.c.h.b16 %v163
  %v1200 = vunpack.c.l.b16 %v164
  %v1201 = vunpack.c.h.b16 %v164
  %v1202 = vunpack.c.l.b16 %v165
  %v1203 = vunpack.c.h.b16 %v165
  %v1204 = vunpack.c.l.b16 %v166
  %v1205 = vunpack.c.h.b16 %v166
  %v1206 = vunpack.c.l.b16 %v167
  %v1207 = vunpack.c.h.b16 %v167
  %v1208 = vunpack.c.l.b16 %v168
  %v1209 = vunpack.c.h.b16 %v168
  %v1210 = vunpack.c.l.b16 %v169
  %v1211 = vunpack.c.h.b16 %v169
  %v1212 = vunpack.c.l.b16 %v170
  %v1213 = vunpack.c.h.b16 %v170
  %v1214 = vunpack.c.l.b16 %v171
  %v1215 = vunpack.c.h.b16 %v171
  %v1216 = vunpack.c.l.b16 %v172
  %v1217 = vunpack.c.h.b16 %v172
  %v1218 = vunpack.c.l.b16 %v173
  %v1219 = vunpack.c.h.b16 %v173
  %v1220 = vunpack.c.l.b16 %v174
  %v1221 = vunpack.c.h.b16 %v174
  %v1222 = vunpack.c.l.b16 %v175
  %v1223 = vunpack.c.h.b16 %v175
  %v1224 = vunpack.c.l.b16 %v176
  %v1225 = vunpack.c.h.b16 %v176
  %v1226 = vunpack.c.l.b16 %v177
  %v1227 = vunpack.c.h.b16 %v177
  %v1228 = vunpack.c.l.b16 %v178
  %v1229 = vunpack.c.h.b16 %v178
  %v1230 = vunpack.c.l.b16 %v179
  %v1231 = vunpack.c.h.b16 %v179
  %v1232 = vunpack.c.l.b16 %v180
  %v1233 = vunpack.c.h.b16 %v180
  %v1234 = vunpack.c.l.b16 %v181
  %v1235 = vunpack.c.h.b16 %v181
  %v1236 = vunpack.c.l.b16 %v182
  %v1237 = vunpack.c.h.b16 %v182
  %v1238 = vunpack.c.l.b16 %v183
  %v1239 = vunpack.c.h.b16 %v183
  %v1240 = vunpack.c.l.b16 %v184
  %v1241 = vunpack.c.h.b16 %v184
  %v1242 = vunpack.c.l.b16 %v185
  %v1243 = vunpack.c.h.b16 %v185
  %v1244 = vunpack.c.l.b16 %v186
  %v1245 = vunpack.c.h.b16 %v186
  %v1246 = vunpack.c.l.b16 %v187
  %v1247 = vunpack.c.h.b16 %v187
  %v1248 = vunpack.c.l.b16 %v188
  %v1249 = vunpack.c.h.b16 %v188
  %v1250 = vunpack.c.l.b16 %v189
  %v1251 = vunpack.c.h.b16 %v189
  %v1252 = vunpack.c.l.b16 %v190
  %v1253 = vunpack.c.h.b16 %v190
  %v1254 = vunpack.c.l.b16 %v191
  %v1255 = vunpack.c.h.b16 %v191
  %v1256 = vunpack.c.l.b16 %v192
  %v1257 = vunpack.c.h.b16 %v192
  %v1258 = vunpack.c.l.b16 %v193
  %v1259 = vunpack.c.h.b16 %v193
  %v1260 = vunpack.c.l.b16 %v194
  %v1261 = vunpack.c.h.b16 %v194
  %v1262 = vunpack.c.l.b16 %v195
  %v1263 = vunpack.c.h.b16 %v195
  %v1264 = vunpack.c.l.b16 %v196
  %v1265 = vunpack.c.h.b16 %v196
  %v1266 = vunpack.c.l.b16 %v197
  %v1267 = vunpack.c.h.b16 %v197
  %v1268 = vunpack.c.l.b16 %v198
  %v1269 = vunpack.c.h.b16 %v198
  %v1270 = vunpack.c.l.b16 %v199
  %v1271 = vunpack.c.h.b16 %v199
  %v1272 = vunpack.c.l.b16 %v200
  %v1273 = vunpack.c.h.b16 %v200
  %v1274 = vunpack.c.l.b16 %v201
  %v1275 = vunpack.c.h.b16 %v201
  %v1276 = vunpack.c.l.b16 %v202
  %v1277 = vunpack.c.h.b16 %v202
  %v1278 = vunpack.c.l.b16 %v203
  %v1279 = vunpack.c.h.b16 %v203
  %v1280 = vunpack.c.l.b16 %v204
  %v1281 = vunpack.c.h.b16 %v204
  %v1282 = vunpack.c.l.b16 %v205
  %v1283 = vunpack.c.h.b16 %v205
  %v1284 = vunpack.c.l.b16 %v206
  %v1285 = vunpack.c.h.b16 %v206
  %v1286 = vunpack.c.l.b16 %v207
  %v1287 = vunpack.c.h.b16 %v207
  %v1288 = vunpack.c.l.b16 %v208
  %v1289 = vunpack.c.h.b16 %v208
  %v1290 = vunpack.c.l.b16 %v209
  %v1291 = vunpack.c.h.b16 %v209
  %v1292 = vunpack.c.l.b16 %v210
  %v1293 = vunpack.c.h.b16 %v210
  %v1294 = vunpack.c.l.b16 %v211
  %v1295 = vunpack.c.h.b16 %v211
  %v1296 = vunpack.c.l.b16 %v212
  %v1297 = vunpack.c.h.b16 %v212
  %v1298 = vunpack.c.l.b16 %v213
  %v1299 = vunpack.c.h.b16 %v213
  %v1300 = vunpack.c.l.b16 %v214
  %v1301 = vunpack.c.h.b16 %v214
  %v1302 = vunpack.c.l.b16 %v215
  %v1303 = vunpack.c.h.b16 %v215
  %v1304 = vunpack.c.l.b16 %v216
  %v1305 = vunpack.c.h.b16 %v216
  %v1306 = vunpack.c.l.b16 %v217
  %v1307 = vunpack.c.h.b16 %v217
  %v1308 = vunpack.c.l.b16 %v218
  %v1309 = vunpack.c.h.b16 %v218
  %v1310 = vunpack.c.l.b16 %v219
  %v1311 = vunpack.c.h.b16 %v219
  %v1312 = vunpack.c.l.b16 %v220
  %v1313 = vunpack.c.h.b16 %v220
  %v1314 = vunpack.c.l.b16 %v221
  %v1315 = vunpack.c.h.b16 %v221
  %v1316 = vunpack.c.l.b16 %v222
  %v1317 = vunpack.c.h.b16 %v222
  %v1318 = vunpack.c.l.b16 %v223
  %v1319 = vunpack.c.h.b16 %v223
  %v1320 = vunpack.c.l.b16 %v224
  %v1321 = vunpack.c.h.b16 %v224
  %v1322 = vunpack.c.l.b16 %v225
  %v1323 = vunpack.c.h.b16 %v225
  %v1324 = vunpack.c.l.b16 %v226
  %v1325 = vunpack.c.h.b16 %v226
  %v1326 = vunpack.c.l.b16 %v227
  %v1327 = vunpack.c.h.b16 %v227
  %v1328 = vunpack.c.l.b16 %v228
  %v1329 = vunpack.c.h.b16 %v228
  %v1330 = vunpack.c.l.b16 %v229
  %v1331 = vunpack.c.h.b16 %v229
  %v1332 = vunpack.c.l.b16 %v230
  %v1333 = vunpack.c.h.b16 %v230
  %v1334 = vunpack.c.l.b16 %v231
  %v1335 = vunpack.c.h.b16 %v231
  %v1336 = vunpack.c.l.b16 %v232
  %v1337 = vunpack.c.h.b16 %v232
  %v1338 = vunpack.c.l.b16 %v233
  %v1339 = vunpack.c.h.b16 %v233
  %v1340 = vunpack.c.l.b16 %v234
  %v1341 = vunpack.c.h.b16 %v234
  %v1342 = vunpack.c.l.b16 %v235
  %v1343 = vunpack.c.h.b16 %v235
  %v1344 = vunpack.c.l.b16 %v236
  %v1345 = vunpack.c.h.b16 %v236
  %v1346 = vunpack.c.l.b16 %v237
  %v1347 = vunpack.c.h.b16 %v237
  %v1348 = vunpack.c.l.b16 %v238
  %v1349 = vunpack.c.h.b16 %v238
  %v1350 = vunpack.c.l.b16 %v239
  %v1351 = vunpack.c.h.b16 %v239
  %v1352 = vunpack.c.l.b16 %v240
  %v1353 = vunpack.c.h.b16 %v240
  %v1354 = vunpack.c.l.b16 %v241
  %v1355 = vunpack.c.h.b16 %v241
  %v1356 = vunpack.c.l.b16 %v242
  %v1357 = vunpack.c.h.b16 %v242
  %v1358 = vunpack.c.l.b16 %v243
  %v1359 = vunpack.c.h.b16 %v243
  %v1360 = vunpack.c.l.b16 %v244
  %v1361 = vunpack.c.h.b16 %v244
  %v1362 = vunpack.c.l.b16 %v245
  %v1363 = vunpack.c.h.b16 %v245
  %v1364 = vunpack.c.l.b16 %v246
  %v1365 = vunpack.c.h.b16 %v246
  %v1366 = vunpack.c.l.b16 %v247
  %v1367 = vunpack.c.h.b16 %v247
  %v1368 = vunpack.c.l.b16 %v248
  %v1369 = vunpack.c.h.b16 %v248
  %v1370 = vunpack.c.l.b16 %v249
  %v1371 = vunpack.c.h.b16 %v249
  %v1372 = vunpack.c.l.b16 %v250
  %v1373 = vunpack.c.h.b16 %v250
  %v1374 = vunpack.c.l.b16 %v251
  %v1375 = vunpack.c.h.b16 %v251
  %v1376 = vunpack.c.l.b16 %v252
  %v1377 = vunpack.c.h.b16 %v252
  %v1378 = vunpack.c.l.b16 %v253
  %v1379 = vunpack.c.h.b16 %v253
  %v1380 = vunpack.c.l.b16 %v254
  %v1381 = vunpack.c.h.b16 %v254
  %v1382 = vunpack.c.l.b16 %v255
  %v1383 = vunpack.c.h.b16 %v255
  %v1384 = vunpack.c.l.b16 %v256
  %v1385 = vunpack.c.h.b16 %v256
  %v1386 = vunpack.c.l.b16 %v257
  %v1387 = vunpack.c.h.b16 %v257
  %v1388 = vunpack.c.l.b16 %v258
  %v1389 = vunpack.c.h.b16 %v258
  %v1390 = vunpack.c.l.b16 %v259
  %v1391 = vunpack.c.h.b16 %v259
  %v1392 = vunpack.c.l.b16 %v260
  %v1393 = vunpack.c.h.b16 %v260
  %v1394 = vunpack.c.l.b16 %v261
  %v1395 = vunpack.c.h.b16 %v261
  %v1396 = vunpack.c.l.b16 %v262
  %v1397 = vunpack.c.h.b16 %v262
  %v1398 = vunpack.c.l.b16 %v263
  %v1399 = vunpack.c.h.b16 %v263
  %v1400 = vunpack.c.l.b16 %v264
  %v1401 = vunpack.c.h.b16 %v264
  %v1402 = vunpack.c.l.b16 %v265
  %v1403 = vunpack.c.h.b16 %v265
  %v1404 = vunpack.c.l.b16 %v266
  %v1405 = vunpack.c.h.b16 %v266
  %v1406 = vunpack.c.l.b16 %v267
  %v1407 = vunpack.c.h.b16 %v267
  %v1408 = vunpack.c.l.b16 %v268
  %v1409 = vunpack.c.h.b16 %v268
  %v1410 = vunpack.c.l.b16 %v269
  %v1411 = vunpack.c.h.b16 %v269
  %v1412 = vunpack.c.l.b16 %v270
  %v1413 = vunpack.c.h.b16 %v270
  %v1414 = vunpack.c.l.b16 %v271
  %v1415 = vunpack.c.h.b16 %v271
  %v1416 = vunpack.c.l.b16 %v272
  %v1417 = vunpack.c.h.b16 %v272
  %v1418 = vunpack.c.l.b16 %v273
  %v1419 = vunpack.c.h.b16 %v273
  %v1420 = vunpack.c.l.b16 %v274
  %v1421 = vunpack.c.h.b16 %v274
  %v1422 = vunpack.c.l.b16 %v275
  %v1423 = vunpack.c.h.b16 %v275
  %v1424 = vunpack.c.l.b16 %v276
  %v1425 = vunpack.c.h.b16 %v276
  %v1426 = vunpack.c.l.b16 %v277
  %v1427 = vunpack.c.h.b16 %v277
  %v1428 = vunpack.c.l.b16 %v278
  %v1429 = vunpack.c.h.b16 %v278
  %v1430 = vunpack.c.l.b16 %v279
  %v1431 = vunpack.c.h.b16 %v279
  %v1432 = vunpack.c.l.b16 %v280
  %v1433 = vunpack.c.h.b16 %v280
  %v1434 = vunpack.c.l.b16 %v281
  %v1435 = vunpack.c.h.b16 %v281
  %v1436 = vunpack.c.l.b16 %v282
  %v1437 = vunpack.c.h.b16 %v282
  %v1438 = vunpack.c.l.b16 %v283
  %v1439 = vunpack.c.h.b16 %v283
  %v1440 = vunpack.c.l.b16 %v284
  %v1441 = vunpack.c.h.b16 %v284
  %v1442 = vunpack.c.l.b16 %v285
  %v1443 = vunpack.c.h.b16 %v285
  %v1444 = vunpack.c.l.b16 %v286
  %v1445 = vunpack.c.h.b16 %v286
  %v1446 = vunpack.c.l.b16 %v287
  %v1447 = vunpack.c.h.b16 %v287
  %v1448 = vunpack.c.l.b16 %v288
  %v1449 = vunpack.c.h.b16 %v288
  %v1450 = vunpack.c.l.b16 %v289
  %v1451 = vunpack.c.h.b16 %v289
  %v1452 = vunpack.c.l.b16 %v290
  %v1453 = vunpack.c.h.b16 %v290
  %v1454 = vunpack.c.l.b16 %v291
  %v1455 = vunpack.c.h.b16 %v291
  %v1456 = vunpack.c.l.b16 %v292
  %v1457 = vunpack.c.h.b16 %v292
  %v1458 = vunpack.c.l.b16 %v293
  %v1459 = vunpack.c.h.b16 %v293
  %v1460 = vunpack.c.l.b16 %v294
  %v1461 = vunpack.c.h.b16 %v294
  %v1462 = vunpack.c.l.b16 %v295
  %v1463 = vunpack.c.h.b16 %v295
  %v1464 = vunpack.c.l.b16 %v296
  %v1465 = vunpack.c.h.b16 %v296
  %v1466 = vunpack.c.l.b16 %v297
  %v1467 = vunpack.c.h.b16 %v297
  %v1468 = vunpack.c.l.b16 %v298
  %v1469 = vunpack.c.h.b16 %v298
  %v1470 = vunpack.c.l.b16 %v299
  %v1471 = vunpack.c.h.b16 %v299
  %v1472 = vunpack.c.l.b16 %v300
  %v1473 = vunpack.c.h.b16 %v300
  %v1474 = vunpack.c.l.b16 %v301
  %v1475 = vunpack.c.h.b16 %v301
  %v1476 = vunpack.c.l.b16 %v302
  %v1477 = vunpack.c.h.b16 %v302
  %v1478 = vunpack.c.l.b16 %v303
  %v1479 = vunpack.c.h.b16 %v303
  %v1480 = vunpack.c.l.b16 %v304
  %v1481 = vunpack.c.h.b16 %v304
  %v1482 = vunpack.c.l.b16 %v305
  %v1483 = vunpack.c.h.b16 %v305
  %v1484 = vunpack.c.l.b16 %v306
  %v1485 = vunpack.c.h.b16 %v306
  %v1486 = vunpack.c.l.b16 %v307
  %v1487 = vunpack.c.h.b16 %v307
  %v1488 = vunpack.c.l.b16 %v308
  %v1489 = vunpack.c.h.b16 %v308
  %v1490 = vunpack.c.l.b16 %v309
  %v1491 = vunpack.c.h.b16 %v309
  %v1492 = vunpack.c.l.b16 %v310
  %v1493 = vunpack.c.h.b16 %v310
  %v1494 = vunpack.c.l.b16 %v311
  %v1495 = vunpack.c.h.b16 %v311
  %v1496 = vunpack.c.l.b16 %v312
  %v1497 = vunpack.c.h.b16 %v312
  %v1498 = vunpack.c.l.b16 %v313
  %v1499 = vunpack.c.h.b16 %v313
  %v1500 = vunpack.c.l.b16 %v314
  %v1501 = vunpack.c.h.b16 %v314
  %v1502 = vunpack.c.l.b16 %v315
  %v1503 = vunpack.c.h.b16 %v315
  %v1504 = vunpack.c.l.b16 %v316
  %v1505 = vunpack.c.h.b16 %v316
  %v1506 = vunpack.c.l.b16 %v317
  %v1507 = vunpack.c.h.b16 %v317
  %v1508 = vunpack.c.l.b16 %v318
  %v1509 = vunpack.c.h.b16 %v318
  %v1510 = vunpack.c.l.b16 %v319
  %v1511 = vunpack.c.h.b16 %v319
  %v1512 = vunpack.c.l.b16 %v320
  %v1513 = vunpack.c.h.b16 %v320
  %v1514 = vunpack.c.l.b16 %v321
  %v1515 = vunpack.c.h.b16 %v321
  %v1516 = vunpack.c.l.b16 %v322
  %v1517 = vunpack.c.h.b16 %v322
  %v1518 = vunpack.c.l.b16 %v323
  %v1519 = vunpack.c.h.b16 %v323
  %v1520 = vunpack.c.l.b16 %v324
  %v1521 = vunpack.c.h.b16 %v324
  %v1522 = vunpack.c.l.b16 %v325
  %v1523 = vunpack.c.h.b16 %v325
  %v1524 = vunpack.c.l.b16 %v326
  %v1525 = vunpack.c.h.b16 %v326
  %v1526 = vunpack.c.l.b16 %v327
  %v1527 = vunpack.c.h.b16 %v327
  %v1528 = vunpack.c.l.b16 %v328
  %v1529 = vunpack.c.h.b16 %v328
  %v1530 = vunpack.c.l.b16 %v329
  %v1531 = vunpack.c.h.b16 %v329
  %v1532 = vunpack.c.l.b16 %v330
  %v1533 = vunpack.c.h.b16 %v330
  %v1534 = vunpack.c.l.b16 %v331
  %v1535 = vunpack.c.h.b16 %v331
  %v1536 = vunpack.c.l.b16 %v332
  %v1537 = vunpack.c.h.b16 %v332
  %v1538 = vunpack.c.l.b16 %v333
  %v1539 = vunpack.c.h.b16 %v333
  %v1540 = vunpack.c.l.b16 %v334
  %v1541 = vunpack.c.h.b16 %v334
  %v1542 = vunpack.c.l.b16 %v335
  %v1543 = vunpack.c.h.b16 %v335
  %v1544 = vunpack.c.l.b16 %v336
  %v1545 = vunpack.c.h.b16 %v336
  %v1546 = vunpack.c.l.b16 %v337
  %v1547 = vunpack.c.h.b16 %v337
  %v1548 = vunpack.c.l.b16 %v338
  %v1549 = vunpack.c.h.b16 %v338
  %v1550 = vunpack.c.l.b16 %v339
  %v1551 = vunpack.c.h.b16 %v339
  %v1552 = vunpack.c.l.b16 %v340
  %v1553 = vunpack.c.h.b16 %v340
  %v1554 = vunpack.c.l.b16 %v341
  %v1555 = vunpack.c.h.b16 %v341
  %v1556 = vunpack.c.l.b16 %v342
  %v1557 = vunpack.c.h.b16 %v342
  %v1558 = vunpack.c.l.b16 %v343
  %v1559 = vunpack.c.h.b16 %v343
  %v1560 = vunpack.c.l.b16 %v344
  %v1561 = vunpack.c.h.b16 %v344
  %v1562 = vunpack.c.l.b16 %v345
  %v1563 = vunpack.c.h.b16 %v345
  %v1564 = vunpack.c.l.b16 %v346
  %v1565 = vunpack.c.h.b16 %v346
  %v1566 = vunpack.c.l.b16 %v347
  %v1567 = vunpack.c.h.b16 %v347
  %v1568 = vunpack.c.l.b16 %v348
  %v1569 = vunpack.c.h.b16 %v348
  %v1570 = vunpack.c.l.b16 %v349
  %v1571 = vunpack.c.h.b16 %v349
  %v1572 = vunpack.c.l.b16 %v350
  %v1573 = vunpack.c.h.b16 %v350
  %v1574 = vunpack.c.l.b16 %v351
  %v1575 = vunpack.c.h.b16 %v351
  %v1576 = vunpack.c.l.b16 %v352
  %v1577 = vunpack.c.h.b16 %v352
  %v1578 = vunpack.c.l.b16 %v353
  %v1579 = vunpack.c.h.b16 %v353
  %v1580 = vunpack.c.l.b16 %v354
  %v1581 = vunpack.c.h.b16 %v354
  %v1582 = vunpack.c.l.b16 %v355
  %v1583 = vunpack.c.h.b16 %v355
  %v1584 = vunpack.c.l.b16 %v356
  %v1585 = vunpack.c.h.b16 %v356
  %v1586 = vunpack.c.l.b16 %v357
  %v1587 = vunpack.c.h.b16 %v357
  %v1588 = vunpack.c.l.b16 %v358
  %v1589 = vunpack.c.h.b16 %v358
  %v1590 = vunpack.c.l.b16 %v359
  %v1591 = vunpack.c.h.b16 %v359
  %v1592 = vunpack.c.l.b16 %v360
  %v1593 = vunpack.c.h.b16 %v360
  %v1594 = vunpack.c.l.b16 %v361
  %v1595 = vunpack.c.h.b16 %v361
  %v1596 = vunpack.c.l.b16 %v362
  %v1597 = vunpack.c.h.b16 %v362
  %v1598 = vunpack.c.l.b16 %v363
  %v1599 = vunpack.c.h.b16 %v363
  %v1600 = vunpack.c.l.b16 %v364
  %v1601 = vunpack.c.h.b16 %v364
  %v1602 = vunpack.c.l.b16 %v365
  %v1603 = vunpack.c.h.b16 %v365
  %v1604 = vunpack.c.l.b16 %v366
  %v1605 = vunpack.c.h.b16 %v366
  %v1606 = vunpack.c.l.b16 %v367
  %v1607 = vunpack.c.h.b16 %v367
  %v1608 = vunpack.c.l.b16 %v368
  %v1609 = vunpack.c.h.b16 %v368
  %v1610 = vunpack.c.l.b16 %v369
  %v1611 = vunpack.c.h.b16 %v369
  %v1612 = vunpack.c.l.b16 %v370
  %v1613 = vunpack.c.h.b16 %v370
  %v1614 = vunpack.c.l.b16 %v371
  %v1615 = vunpack.c.h.b16 %v371
  %v1616 = vunpack.c.l.b16 %v372
  %v1617 = vunpack.c.h.b16 %v372
  %v1618 = vunpack.c.l.b16 %v373
  %v1619 = vunpack.c.h.b16 %v373
  %v1620 = vunpack.c.l.b16 %v374
  %v1621 = vunpack.c.h.b16 %v374
  %v1622 = vunpack.c.l.b16 %v375
  %v1623 = vunpack.c.h.b16 %v375
  %v1624 = vunpack.c.l.b16 %v376
  %v1625 = vunpack.c.h.b16 %v376
  %v1626 = vunpack.c.l.b16 %v377
  %v1627 = vunpack.c.h.b16 %v377
  %v1628 = vunpack.c.l.b16 %v378
  %v1629 = vunpack.c.h.b16 %v378
  %v1630 = vunpack.c.l.b16 %v379
  %v1631 = vunpack.c.h.b16 %v379
  %v1632 = vunpack.c.l.b16 %v380
  %v1633 = vunpack.c.h.b16 %v380
  %v1634 = vunpack.c.l.b16 %v381
  %v1635 = vunpack.c.h.b16 %v381
  %v1636 = vunpack.c.l.b16 %v382
  %v1637 = vunpack.c.h.b16 %v382
  %v1638 = vunpack.c.l.b16 %v383
  %v1639 = vunpack.c.h.b16 %v383
  %v1640 = vunpack.c.l.b16 %v384
  %v1641 = vunpack.c.h.b16 %v384
  %v1642 = vunpack.c.l.b16 %v385
  %v1643 = vunpack.c.h.b16 %v385
  %v1644 = vunpack.c.l.b16 %v386
  %v1645 = vunpack.c.h.b16 %v386
  %v1646 = vunpack.c.l.b16 %v387
  %v1647 = vunpack.c.h.b16 %v387
  %v1648 = vunpack.c.l.b16 %v388
  %v1649 = vunpack.c.h.b16 %v388
  %v1650 = vunpack.c.l.b16 %v389
  %v1651 = vunpack.c.h.b16 %v389
  %v1652 = vunpack.c.l.b16 %v390
  %v1653 = vunpack.c.h.b16 %v390
  %v1654 = vunpack.c.l.b16 %v391
  %v1655 = vunpack.c.h.b16 %v391
  %v1656 = vunpack.c.l.b16 %v392
  %v1657 = vunpack.c.h.b16 %v392
  %v1658 = vunpack.c.l.b16 %v393
  %v1659 = vunpack.c.h.b16 %v393
  %v1660 = vunpack.c.l.b16 %v394
  %v1661 = vunpack.c.h.b16 %v394
  %v1662 = vunpack.c.l.b16 %v395
  %v1663 = vunpack.c.h.b16 %v395
  %v1664 = vunpack.c.l.b16 %v396
  %v1665 = vunpack.c.h.b16 %v396
  %v1666 = vunpack.c.l.b16 %v397
  %v1667 = vunpack.c.h.b16 %v397
  %v1668 = vunpack.c.l.b16 %v398
  %v1669 = vunpack.c.h.b16 %v398
  %v1670 = vunpack.c.l.b16 %v399
  %v1671 = vunpack.c.h.b16 %v399
  %v1672 = vunpack.c.l.b16 %v400
  %v1673 = vunpack.c.h.b16 %v400
  %v1674 = vunpack.c.l.b16 %v401
  %v1675 = vunpack.c.h.b16 %v401
  %v1676 = vunpack.c.l.b16 %v402
  %v1677 = vunpack.c.h.b16 %v402
  %v1678 = vunpack.c.l.b16 %v403
  %v1679 = vunpack.c.h.b16 %v403
  %v1680 = vunpack.c.l.b16 %v404
  %v1681 = vunpack.c.h.b16 %v404
  %v1682 = vunpack.c.l.b16 %v405
  %v1683 = vunpack.c.h.b16 %v405
  %v1684 = vunpack.c.l.b16 %v406
  %v1685 = vunpack.c.h.b16 %v406
  %v1686 = vunpack.c.l.b16 %v407
  %v1687 = vunpack.c.h.b16 %v407
  %v1688 = vunpack.c.l.b16 %v408
  %v1689 = vunpack.c.h.b16 %v408
  %v1690 = vunpack.c.l.b16 %v409
  %v1691 = vunpack.c.h.b16 %v409
  %v1692 = vunpack.c.l.b16 %v410
  %v1693 = vunpack.c.h.b16 %v410
  %v1694 = vunpack.c.l.b16 %v411
  %v1695 = vunpack.c.h.b16 %v411
  %v1696 = vunpack.c.l.b16 %v412
  %v1697 = vunpack.c.h.b16 %v412
  %v1698 = vunpack.c.l.b16 %v413
  %v1699 = vunpack.c.h.b16 %v413
  %v1700 = vunpack.c.l.b16 %v414
  %v1701 = vunpack.c.h.b16 %v414
  %v1702 = vunpack.c.l.b16 %v415
  %v1703 = vunpack.c.h.b16 %v415
  %v1704 = vunpack.c.l.b16 %v416
  %v1705 = vunpack.c.h.b16 %v416
  %v1706 = vunpack.c.l.b16 %v417
  %v1707 = vunpack.c.h.b16 %v417
  %v1708 = vunpack.c.l.b16 %v418
  %v1709 = vunpack.c.h.b16 %v418
  %v1710 = vunpack.c.l.b16 %v419
  %v1711 = vunpack.c.h.b16 %v419
  %v1712 = vunpack.c.l.b16 %v420
  %v1713 = vunpack.c.h.b16 %v420
  %v1714 = vunpack.c.l.b16 %v421
  %v1715 = vunpack.c.h.b16 %v421
  %v1716 = vunpack.c.l.b16 %v422
  %v1717 = vunpack.c.h.b16 %v422
  %v1718 = vunpack.c.l.b16 %v423
  %v1719 = vunpack.c.h.b16 %v423
  %v1720 = vunpack.c.l.b16 %v424
  %v1721 = vunpack.c.h.b16 %v424
  %v1722 = vunpack.c.l.b16 %v425
  %v1723 = vunpack.c.h.b16 %v425
  %v1724 = vunpack.c.l.b16 %v426
  %v1725 = vunpack.c.h.b16 %v426
  %v1726 = vunpack.c.l.b16 %v427
  %v1727 = vunpack.c.h.b16 %v427
  %v1728 = vunpack.c.l.b16 %v428
  %v1729 = vunpack.c.h.b16 %v428
  %v1730 = vunpack.c.l.b16 %v429
  %v1731 = vunpack.c.h.b16 %v429
  %v1732 = vunpack.c.l.b16 %v430
  %v1733 = vunpack.c.h.b16 %v430
  %v1734 = vunpack.c.l.b16 %v431
  %v1735 = vunpack.c.h.b16 %v431
  %v1736 = vunpack.c.l.b16 %v432
  %v1737 = vunpack.c.h.b16 %v432
  %v1738 = vunpack.c.l.b16 %v433
  %v1739 = vunpack.c.h.b16 %v433
  %v1740 = vunpack.c.l.b16 %v434
  %v1741 = vunpack.c.h.b16 %v434
  %v1742 = vunpack.c.l.b16 %v435
  %v1743 = vunpack.c.h.b16 %v435
  %v1744 = vunpack.c.l.b16 %v436
  %v1745 = vunpack.c.h.b16 %v436
  %v1746 = vunpack.c.l.b16 %v437
  %v1747 = vunpack.c.h.b16 %v437
  %v1748 = vunpack.c.l.b16 %v438
  %v1749 = vunpack.c.h.b16 %v438
  %v1750 = vunpack.c.l.b16 %v439
  %v1751 = vunpack.c.h.b16 %v439
  %v1752 = vunpack.c.l.b16 %v440
  %v1753 = vunpack.c.h.b16 %v440
  %v1754 = vunpack.c.l.b16 %v441
  %v1755 = vunpack.c.h.b16 %v441
  %v1756 = vunpack.c.l.b16 %v442
  %v1757 = vunpack.c.h.b16 %v442
  %v1758 = vunpack.c.l.b16 %v443
  %v1759 = vunpack.c.h.b16 %v443
  %v1760 = vunpack.c.l.b16 %v444
  %v1761 = vunpack.c.h.b16 %v444
  %v1762 = vunpack.c.l.b16 %v445
  %v1763 = vunpack.c.h.b16 %v445
  %v1764 = vunpack.c.l.b16 %v446
  %v1765 = vunpack.c.h.b16 %v446
  %v1766 = vunpack.c.l.b16 %v447
  %v1767 = vunpack.c.h.b16 %v447
  %v1768 = vunpack.c.l.b16 %v448
  %v1769 = vunpack.c.h.b16 %v448
  %v1770 = vunpack.c.l.b16 %v449
  %v1771 = vunpack.c.h.b16 %v449
  %v1772 = vunpack.c.l.b16 %v450
  %v1773 = vunpack.c.h.b16 %v450
  %v1774 = vunpack.c.l.b16 %v451
  %v1775 = vunpack.c.h.b16 %v451
  %v1776 = vpack.c.b16 %v948, %v944
  %v1777 = vpack.c.b16 %v949, %v945
  %v1778 = vpack.c.b16 %v950, %v946
  %v1779 = vpack.c.b16 %v951, %v947
  %v1780 = vpack.c.b16 %v956, %v952
  %v1781 = vpack.c.b16 %v957, %v953
  %v1782 = vpack.c.b16 %v958, %v954
  %v1783 = vpack.c.b16 %v959, %v955
  %v1784 = vpack.c.b16 %v964, %v960
  %v1785 = vpack.c.b16 %v965, %v961
  %v1786 = vpack.c.b16 %v966, %v962
  %v1787 = vpack.c.b16 %v967, %v963
  %v1788 = vpack.c.b16 %v972, %v968
  %v1789 = vpack.c.b16 %v973, %v969
  %v1790 = vpack.c.b16 %v974, %v970
  %v1791 = vpack.c.b16 %v975, %v971
  %v1792 = vpack.c.b16 %v980, %v976
  %v1793 = vpack.c.b16 %v981, %v977
  %v1794 = vpack.c.b16 %v982, %v978
  %v1795 = vpack.c.b16 %v983, %v979
  %v1796 = vpack.c.b16 %v988, %v984
  %v1797 = vpack.c.b16 %v989, %v985
  %v1798 = vpack.c.b16 %v990, %v986
  %v1799 = vpack.c.b16 %v991, %v987
  %v1800 = vpack.c.b16 %v996, %v992
  %v1801 = vpack.c.b16 %v997, %v993
  %v1802 = vpack.c.b16 %v998, %v994
  %v1803 = vpack.c.b16 %v999, %v995
  %v1804 = vpack.c.b16 %v1004, %v1000
  %v1805 = vpack.c.b16 %v1005, %v1001
  %v1806 = vpack.c.b16 %v1006, %v1002
  %v1807 = vpack.c.b16 %v1007, %v1003
  %v1808 = vpack.c.b16 %v1012, %v1008
  %v1809 = vpack.c.b16 %v1013, %v1009
  %v1810 = vpack.c.b16 %v1014, %v1010
  %v1811 = vpack.c.b16 %v1015, %v1011
  %v1812 = vpack.c.b16 %v1020, %v1016
  %v1813 = vpack.c.b16 %v1021, %v1017
  %v1814 = vpack.c.b16 %v1022, %v1018
  %v1815 = vpack.c.b16 %v1023, %v1019
  %v1816 = vpack.c.b16 %v1028, %v1024
  %v1817 = vpack.c.b16 %v1029, %v1025
  %v1818 = vpack.c.b16 %v1030, %v1026
  %v1819 = vpack.c.b16 %v1031, %v1027
  %v1820 = vpack.c.b16 %v1036, %v1032
  %v1821 = vpack.c.b16 %v1037, %v1033
  %v1822 = vpack.c.b16 %v1038, %v1034
  %v1823 = vpack.c.b16 %v1039, %v1035
  %v1824 = vpack.c.b16 %v1044, %v1040
  %v1825 = vpack.c.b16 %v1045, %v1041
  %v1826 = vpack.c.b16 %v1046, %v1042
  %v1827 = vpack.c.b16 %v1047, %v1043
  %v1828 = vpack.c.b16 %v1052, %v1048
  %v1829 = vpack.c.b16 %v1053, %v1049
  %v1830 = vpack.c.b16 %v1054, %v1050
  %v1831 = vpack.c.b16 %v1055, %v1051
  %v1832 = vpack.c.b16 %v1060, %v1056
  %v1833 = vpack.c.b16 %v1061, %v1057
  %v1834 = vpack.c.b16 %v1062, %v1058
  %v1835 = vpack.c.b16 %v1063, %v1059
  %v1836 = vpack.c.b16 %v1068, %v1064
  %v1837 = vpack.c.b16 %v1069, %v1065
  %v1838 = vpack.c.b16 %v1070, %v1066
  %v1839 = vpack.c.b16 %v1071, %v1067
  %v1840 = vpack.c.b16 %v1076, %v1072
  %v1841 = vpack.c.b16 %v1077, %v1073
  %v1842 = vpack.c.b16 %v1078, %v1074
  %v1843 = vpack.c.b16 %v1079, %v1075
  %v1844 = vpack.c.b16 %v1084, %v1080
  %v1845 = vpack.c.b16 %v1085, %v1081
  %v1846 = vpack.c.b16 %v1086, %v1082
  %v1847 = vpack.c.b16 %v1087, %v1083
  %v1848 = vpack.c.b16 %v1092, %v1088
  %v1849 = vpack.c.b16 %v1093, %v1089
  %v1850 = vpack.c.b16 %v1094, %v1090
  %v1851 = vpack.c.b16 %v1095, %v1091
  %v1852 = vpack.c.b16 %v1100, %v1096
  %v1853 = vpack.c.b16 %v1101, %v1097
  %v1854 = vpack.c.b16 %v1102, %v1098
  %v1855 = vpack.c.b16 %v1103, %v1099
  %v1856 = vpack.c.b16 %v1108, %v1104
  %v1857 = vpack.c.b16 %v1109, %v1105
  %v1858 = vpack.c.b16 %v1110, %v1106
  %v1859 = vpack.c.b16 %v1111, %v1107
  %v1860 = vpack.c.b16 %v1116, %v1112
  %v1861 = vpack.c.b16 %v1117, %v1113
  %v1862 = vpack.c.b16 %v1118, %v1114
  %v1863 = vpack.c.b16 %v1119, %v1115
  %v1864 = vpack.c.b16 %v1124, %v1120
  %v1865 = vpack.c.b16 %v1125, %v1121
  %v1866 = vpack.c.b16 %v1126, %v1122
  %v1867 = vpack.c.b16 %v1127, %v1123
  %v1868 = vpack.c.b16 %v1132, %v1128
  %v1869 = vpack.c.b16 %v1133, %v1129
  %v1870 = vpack.c.b16 %v1134, %v1130
  %v1871 = vpack.c.b16 %v1135, %v1131
  %v1872 = vpack.c.b16 %v1140, %v1136
  %v1873 = vpack.c.b16 %v1141, %v1137
  %v1874 = vpack.c.b16 %v1142, %v1138
  %v1875 = vpack.c.b16 %v1143, %v1139
  %v1876 = vpack.c.b16 %v1148, %v1144
  %v1877 = vpack.c.b16 %v1149, %v1145
  %v1878 = vpack.c.b16 %v1150, %v1146
  %v1879 = vpack.c.b16 %v1151, %v1147
  %v1880 = vpack.c.b16 %v1156, %v1152
  %v1881 = vpack.c.b16 %v1157, %v1153
  %v1882 = vpack.c.b16 %v1158, %v1154
  %v1883 = vpack.c.b16 %v1159, %v1155
  %v1884 = vpack.c.b16 %v1164, %v1160
  %v1885 = vpack.c.b16 %v1165, %v1161
  %v1886 = vpack.c.b16 %v1166, %v1162
  %v1887 = vpack.c.b16 %v1167, %v1163
  %v1888 = vpack.c.b16 %v1172, %v1168
  %v1889 = vpack.c.b16 %v1173, %v1169
  %v1890 = vpack.c.b16 %v1174, %v1170
  %v1891 = vpack.c.b16 %v1175, %v1171
  %v1892 = vpack.c.b16 %v1180, %v1176
  %v1893 = vpack.c.b16 %v1181, %v1177
  %v1894 = vpack.c.b16 %v1182, %v1178
  %v1895 = vpack.c.b16 %v1183, %v1179
  %v1896 = vpack.c.b16 %v1188, %v1184
  %v1897 = vpack.c.b16 %v1189, %v1185
  %v1898 = vpack.c.b16 %v1190, %v1186
  %v1899 = vpack.c.b16 %v1191, %v1187
  %v1900 = vpack.c.b16 %v1196, %v1192
  %v1901 = vpack.c.b16 %v1197, %v1193
  %v1902 = vpack.c.b16 %v1198, %v1194
  %v1903 = vpack.c.b16 %v1199, %v1195
  %v1904 = vpack.c.b16 %v1204, %v1200
  %v1905 = vpack.c.b16 %v1205, %v1201
  %v1906 = vpack.c.b16 %v1206, %v1202
  %v1907 = vpack.c.b16 %v1207, %v1203
  %v1908 = vpack.c.b16 %v1212, %v1208
  %v1909 = vpack.c.b16 %v1213, %v1209
  %v1910 = vpack.c.b16 %v1214, %v1210
  %v1911 = vpack.c.b16 %v1215, %v1211
  %v1912 = vpack.c.b16 %v1220, %v1216
  %v1913 = vpack.c.b16 %v1221, %v1217
  %v1914 = vpack.c.b16 %v1222, %v1218
  %v1915 = vpack.c.b16 %v1223, %v1219
  %v1916 = vpack.c.b16 %v1228, %v1224
  %v1917 = vpack.c.b16 %v1229, %v1225
  %v1918 = vpack.c.b16 %v1230, %v1226
  %v1919 = vpack.c.b16 %v1231, %v1227
  %v1920 = vpack.c.b16 %v1236, %v1232
  %v1921 = vpack.c.b16 %v1237, %v1233
  %v1922 = vpack.c.b16 %v1238, %v1234
  %v1923 = vpack.c.b16 %v1239, %v1235
  %v1924 = vpack.c.b16 %v1244, %v1240
  %v1925 = vpack.c.b16 %v1245, %v1241
  %v1926 = vpack.c.b16 %v1246, %v1242
  %v1927 = vpack.c.b16 %v1247, %v1243
  %v1928 = vpack.c.b16 %v1252, %v1248
  %v1929 = vpack.c.b16 %v1253, %v1249
  %v1930 = vpack.c.b16 %v1254, %v1250
  %v1931 = vpack.c.b16 %v1255, %v1251
  %v1932 = vpack.c.b16 %v1260, %v1256
  %v1933 = vpack.c.b16 %v1261, %v1257
  %v1934 = vpack.c.b16 %v1262, %v1258
  %v1935 = vpack.c.b16 %v1263, %v1259
  %v1936 = vpack.c.b16 %v1268, %v1264
  %v1937 = vpack.c.b16 %v1269, %v1265
  %v1938 = vpack.c.b16 %v1270, %v1266
  %v1939 = vpack.c.b16 %v1271, %v1267
  %v1940 = vpack.c.b16 %v1276, %v1272
  %v1941 = vpack.c.b16 %v1277, %v1273
  %v1942 = vpack.c.b16 %v1278, %v1274
  %v1943 = vpack.c.b16 %v1279, %v1275
  %v1944 = vpack.c.b16 %v1284, %v1280
  %v1945 = vpack.c.b16 %v1285, %v1281
  %v1946 = vpack.c.b16 %v1286, %v1282
  %v1947 = vpack.c.b16 %v1287, %v1283
  %v1948 = vpack.c.b16 %v1292, %v1288
  %v1949 = vpack.c.b16 %v1293, %v1289
  %v1950 = vpack.c.b16 %v1294, %v1290
  %v1951 = vpack.c.b16 %v1295, %v1291
  %v1952 = vpack.c.b16 %v1300, %v1296
  %v1953 = vpack.c.b16 %v1301, %v1297
  %v1954 = vpack.c.b16 %v1302, %v1298
  %v1955 = vpack.c.b16 %v1303, %v1299
  %v1956 = vpack.c.b16 %v1308, %v1304
  %v1957 = vpack.c.b16 %v1309, %v1305
  %v1958 = vpack.c.b16 %v1310, %v1306
  %v1959 = vpack.c.b16 %v1311, %v1307
  %v1960 = vpack.c.b16 %v1316, %v1312
  %v1961 = vpack.c.b16 %v1317, %v1313
  %v1962 = vpack.c.b16 %v1318, %v1314
  %v1963 = vpack.c.b16 %v1319, %v1315
  %v1964 = vpack.c.b16 %v1324, %v1320
  %v1965 = vpack.c.b16 %v1325, %v1321
  %v1966 = vpack.c.b16 %v1326, %v1322
  %v1967 = vpack.c.b16 %v1327, %v1323
  %v1968 = vpack.c.b16 %v1332, %v1328
  %v1969 = vpack.c.b16 %v1333, %v1329
  %v1970 = vpack.c.b16 %v1334, %v1330
  %v1971 = vpack.c.b16 %v1335, %v1331
  %v1972 = vpack.c.b16 %v1340, %v1336
  %v1973 = vpack.c.b16 %v1341, %v1337
  %v1974 = vpack.c.b16 %v1342, %v1338
  %v1975 = vpack.c.b16 %v1343, %v1339
  %v1976 = vpack.c.b16 %v1348, %v1344
  %v1977 = vpack.c.b16 %v1349, %v1345
  %v1978 = vpack.c.b16 %v1350, %v1346
  %v1979 = vpack.c.b16 %v1351, %v1347
  %v1980 = vpack.c.b16 %v1356, %v1352
  %v1981 = vpack.c.b16 %v1357, %v1353
  %v1982 = vpack.c.b16 %v1358, %v1354
  %v1983 = vpack.c.b16 %v1359, %v1355
  %v1984 = vpack.c.b16 %v1364, %v1360
  %v1985 = vpack.c.b16 %v1365, %v1361
  %v1986 = vpack.c.b16 %v1366, %v1362
  %v1987 = vpack.c.b16 %v1367, %v1363
  %v1988 = vpack.c.b16 %v1372, %v1368
  %v1989 = vpack.c.b16 %v1373, %v1369
  %v1990 = vpack.c.b16 %v1374, %v1370
  %v1991 = vpack.c.b16 %v1375, %v1371
  %v1992 = vpack.c.b16 %v1380, %v1376
  %v1993 = vpack.c.b16 %v1381, %v1377
  %v1994 = vpack.c.b16 %v1382, %v1378
  %v1995 = vpack.c.b16 %v1383, %v1379
  %v1996 = vpack.c.b16 %v1388, %v1384
  %v1997 = vpack.c.b16 %v1389, %v1385
  %v1998 = vpack.c.b16 %v1390, %v1386
  %v1999 = vpack.c.b16 %v1391, %v1387
  %v2000 = vpack.c.b16 %v1396, %v1392
  %v2001 = vpack.c.b16 %v1397, %v1393
  %v2002 = vpack.c.b16 %v1398, %v1394
  %v2003 = vpack.c.b16 %v1399, %v1395
  %v2004 = vpack.c.b16 %v1404, %v1400
  %v2005 = vpack.c.b16 %v1405, %v1401
  %v2006 = vpack.c.b16 %v1406, %v1402
  %v2007 = vpack.c.b16 %v1407, %v1403
  %v2008 = vpack.c.b16 %v1412, %v1408
  %v2009 = vpack.c.b16 %v1413, %v1409
  %v2010 = vpack.c.b16 %v1414, %v1410
  %v2011 = vpack.c.b16 %v1415, %v1411
  %v2012 = vpack.c.b16 %v1420, %v1416
  %v2013 = vpack.c.b16 %v1421, %v1417
  %v2014 = vpack.c.b16 %v1422, %v1418
  %v2015 = vpack.c.b16 %v1423, %v1419
  %v2016 = vpack.c.b16 %v1428, %v1424
  %v2017 = vpack.c.b16 %v1429, %v1425
  %v2018 = vpack.c.b16 %v1430, %v1426
  %v2019 = vpack.c.b16 %v1431, %v1427
  %v2020 = vpack.c.b16 %v1436, %v1432
  %v2021 = vpack.c.b16 %v1437, %v1433
  %v2022 = vpack.c.b16 %v1438, %v1434
  %v2023 = vpack.c.b16 %v1439, %v1435
  %v2024 = vpack.c.b16 %v1444, %v1440
  %v2025 = vpack.c.b16 %v1445, %v1441
  %v2026 = vpack.c.b16 %v1446, %v1442
  %v2027 = vpack.c.b16 %v1447, %v1443
  %v2028 = vpack.c.b16 %v1452, %v1448
  %v2029 = vpack.c.b16 %v1453, %v1449
  %v2030 = vpack.c.b16 %v1454, %v1450
  %v2031 = vpack.c.b16 %v1455, %v1451
  %v2032 = vpack.c.b16 %v1460, %v1456
  %v2033 = vpack.c.b16 %v1461, %v1457
  %v2034 = vpack.c.b16 %v1462, %v1458
  %v2035 = vpack.c.b16 %v1463, %v1459
  %v2036 = vpack.c.b16 %v1468, %v1464
  %v2037 = vpack.c.b16 %v1469, %v1465
  %v2038 = vpack.c.b16 %v1470, %v1466
  %v2039 = vpack.c.b16 %v1471, %v1467
  %v2040 = vpack.c.b16 %v1476, %v1472
  %v2041 = vpack.c.b16 %v1477, %v1473
  %v2042 = vpack.c.b16 %v1478, %v1474
  %v2043 = vpack.c.b16 %v1479, %v1475
  %v2044 = vpack.c.b16 %v1484, %v1480
  %v2045 = vpack.c.b16 %v1485, %v1481
  %v2046 = vpack.c.b16 %v1486, %v1482
  %v2047 = vpack.c.b16 %v1487, %v1483
  %v2048 = vpack.c.b16 %v1492, %v1488
  %v2049 = vpack.c.b16 %v1493, %v1489
  %v2050 = vpack.c.b16 %v1494, %v1490
  %v2051 = vpack.c.b16 %v1495, %v1491
  %v2052 = vpack.c.b16 %v1500, %v1496
  %v2053 = vpack.c.b16 %v1501, %v1497
  %v2054 = vpack.c.b16 %v1502, %v1498
  %v2055 = vpack.c.b16 %v1503, %v1499
  %v2056 = vpack.c.b16 %v1508, %v1504
  %v2057 = vpack.c.b16 %v1509, %v1505
  %v2058 = vpack.c.b16 %v1510, %v1506
  %v2059 = vpack.c.b16 %v1511, %v1507
  %v2060 = vpack.c.b16 %v1516, %v1512
  %v2061 = vpack.c.b16 %v1517, %v1513
  %v2062 = vpack.c.b16 %v1518, %v1514
  %v2063 = vpack.c.b16 %v1519, %v1515
  %v2064 = vpack.c.b16 %v1524, %v1520
  %v2065 = vpack.c.b16 %v1525, %v1521
  %v2066 = vpack.c.b16 %v1526, %v1522
  %v2067 = vpack.c.b16 %v1527, %v1523
  %v2068 = vpack.c.b16 %v1532, %v1528
  %v2069 = vpack.c.b16 %v1533, %v1529
  %v2070 = vpack.c.b16 %v1534, %v1530
  %v2071 = vpack.c.b16 %v1535, %v1531
  %v2072 = vpack.c.b16 %v1540, %v1536
  %v2073 = vpack.c.b16 %v1541, %v1537
  %v2074 = vpack.c.b16 %v1542, %v1538
  %v2075 = vpack.c.b16 %v1543, %v1539
  %v2076 = vpack.c.b16 %v1548, %v1544
  %v2077 = vpack.c.b16 %v1549, %v1545
  %v2078 = vpack.c.b16 %v1550, %v1546
  %v2079 = vpack.c.b16 %v1551, %v1547
  %v2080 = vpack.c.b16 %v1556, %v1552
  %v2081 = vpack.c.b16 %v1557, %v1553
  %v2082 = vpack.c.b16 %v1558, %v1554
  %v2083 = vpack.c.b16 %v1559, %v1555
  %v2084 = vpack.c.b16 %v1564, %v1560
  %v2085 = vpack.c.b16 %v1565, %v1561
  %v2086 = vpack.c.b16 %v1566, %v1562
  %v2087 = vpack.c.b16 %v1567, %v1563
  %v2088 = vpack.c.b16 %v1572, %v1568
  %v2089 = vpack.c.b16 %v1573, %v1569
  %v2090 = vpack.c.b16 %v1574, %v1570
  %v2091 = vpack.c.b16 %v1575, %v1571
  %v2092 = vpack.c.b16 %v1580, %v1576
  %v2093 = vpack.c.b16 %v1581, %v1577
  %v2094 = vpack.c.b16 %v1582, %v1578
  %v2095 = vpack.c.b16 %v1583, %v1579
  %v2096 = vpack.c.b16 %v1588, %v1584
  %v2097 = vpack.c.b16 %v1589, %v1585
  %v2098 = vpack.c.b16 %v1590, %v1586
  %v2099 = vpack.c.b16 %v1591, %v1587
  %v2100 = vpack.c.b16 %v1596, %v1592
  %v2101 = vpack.c.b16 %v1597, %v1593
  %v2102 = vpack.c.b16 %v1598, %v1594
  %v2103 = vpack.c.b16 %v1599, %v1595
  %v2104 = vpack.c.b16 %v1604, %v1600
  %v2105 = vpack.c.b16 %v1605, %v1601
  %v2106 = vpack.c.b16 %v1606, %v1602
  %v2107 = vpack.c.b16 %v1607, %v1603
  %v2108 = vpack.c.b16 %v1612, %v1608
  %v2109 = vpack.c.b16 %v1613, %v1609
  %v2110 = vpack.c.b16 %v1614, %v1610
  %v2111 = vpack.c.b16 %v1615, %v1611
  %v2112 = vpack.c.b16 %v1620, %v1616
  %v2113 = vpack.c.b16 %v1621, %v1617
  %v2114 = vpack.c.b16 %v1622, %v1618
  %v2115 = vpack.c.b16 %v1623, %v1619
  %v2116 = vpack.c.b16 %v1628, %v1624
  %v2117 = vpack.c.b16 %v1629, %v1625
  %v2118 = vpack.c.b16 %v1630, %v1626
  %v2119 = vpack.c.b16 %v1631, %v1627
  %v2120 = vpack.c.b16 %v1636, %v1632
  %v2121 = vpack.c.b16 %v1637, %v1633
  %v2122 = vpack.c.b16 %v1638, %v1634
  %v2123 = vpack.c.b16 %v1639, %v1635
  %v2124 = vpack.c.b16 %v1644, %v1640
  %v2125 = vpack.c.b16 %v1645, %v1641
  %v2126 = vpack.c.b16 %v1646, %v1642
  %v2127 = vpack.c.b16 %v1647, %v1643
  %v2128 = vpack.c.b16 %v1652, %v1648
  %v2129 = vpack.c.b16 %v1653, %v1649
  %v2130 = vpack.c.b16 %v1654, %v1650
  %v2131 = vpack.c.b16 %v1655, %v1651
  %v2132 = vpack.c.b16 %v1660, %v1656
  %v2133 = vpack.c.b16 %v1661, %v1657
  %v2134 = vpack.c.b16 %v1662, %v1658
  %v2135 = vpack.c.b16 %v1663, %v1659
  %v2136 = vpack.c.b16 %v1668, %v1664
  %v2137 = vpack.c.b16 %v1669, %v1665
  %v2138 = vpack.c.b16 %v1670, %v1666
  %v2139 = vpack.c.b16 %v1671, %v1667
  %v2140 = vpack.c.b16 %v1676, %v1672
  %v2141 = vpack.c.b16 %v1677, %v1673
  %v2142 = vpack.c.b16 %v1678, %v1674
  %v2143 = vpack.c.b16 %v1679, %v1675
  %v2144 = vpack.c.b16 %v1684, %v1680
  %v2145 = vpack.c.b16 %v1685, %v1681
  %v2146 = vpack.c.b16 %v1686, %v1682
  %v2147 = vpack.c.b16 %v1687, %v1683
  %v2148 = vpack.c.b16 %v1692, %v1688
  %v2149 = vpack.c.b16 %v1693, %v1689
  %v2150 = vpack.c.b16 %v1694, %v1690
  %v2151 = vpack.c.b16 %v1695, %v1691
  %v2152 = vpack.c.b16 %v1700, %v1696
  %v2153 = vpack.c.b16 %v1701, %v1697
  %v2154 = vpack.c.b16 %v1702, %v1698
  %v2155 = vpack.c.b16 %v1703, %v1699
  %v2156 = vpack.c.b16 %v1708, %v1704
  %v2157 = vpack.c.b16 %v1709, %v1705
  %v2158 = vpack.c.b16 %v1710, %v1706
  %v2159 = vpack.c.b16 %v1711, %v1707
  %v2160 = vpack.c.b16 %v1716, %v1712
  %v2161 = vpack.c.b16 %v1717, %v1713
  %v2162 = vpack.c.b16 %v1718, %v1714
  %v2163 = vpack.c.b16 %v1719, %v1715
  %v2164 = vpack.c.b16 %v1724, %v1720
  %v2165 = vpack.c.b16 %v1725, %v1721
  %v2166 = vpack.c.b16 %v1726, %v1722
  %v2167 = vpack.c.b16 %v1727, %v1723
  %v2168 = vpack.c.b16 %v1732, %v1728
  %v2169 = vpack.c.b16 %v1733, %v1729
  %v2170 = vpack.c.b16 %v1734, %v1730
  %v2171 = vpack.c.b16 %v1735, %v1731
  %v2172 = vpack.c.b16 %v1740, %v1736
  %v2173 = vpack.c.b16 %v1741, %v1737
  %v2174 = vpack.c.b16 %v1742, %v1738
  %v2175 = vpack.c.b16 %v1743, %v1739
  %v2176 = vpack.c.b16 %v1748, %v1744
  %v2177 = vpack.c.b16 %v1749, %v1745
  %v2178 = vpack.c.b16 %v1750, %v1746
  %v2179 = vpack.c.b16 %v1751, %v1747
  %v2180 = vpack.c.b16 %v1756, %v1752
  %v2181 = vpack.c.b16 %v1757, %v1753
  %v2182 = vpack.c.b16 %v1758, %v1754
  %v2183 = vpack.c.b16 %v1759, %v1755
  %v2184 = vpack.c.b16 %v1764, %v1760
  %v2185 = vpack.c.b16 %v1765, %v1761
  %v2186 = vpack.c.b16 %v1766, %v1762
  %v2187 = vpack.c.b16 %v1767, %v1763
  %v2188 = vpack.c.b16 %v1772, %v1768
  %v2189 = vpack.c.b16 %v1773, %v1769
  %v2190 = vpack.c.b16 %v1774, %v1770
  %v2191 = vpack.c.b16 %v1775, %v1771
  %2608 = vmatpush.bf16.msra.mxu0 %v1804
  %2609 = vmatpush.bf16.msra.mxu0 %v1800
  %2610 = vmatpush.bf16.msra.mxu0 %v1796
  %2611 = vmatpush.bf16.msra.mxu0 %v1792
  %2612 = vmatpush.bf16.msra.mxu0 %v1788
  %2613 = vmatpush.bf16.msra.mxu0 %v1784
  %2614 = vmatpush.bf16.msra.mxu0 %v1780
  %2615 = vmatpush.bf16.msra.mxu0 %v1776
  %2616 = vmatmul.bf16.gmra.mxu0 %v502
  %v2617 = vpop.f32.mrf.mxu0
  %v2618 = vadd.f32 %v454, %v2617
  %v2619 = vpop.f32.mrf.mxu0
  %v2620 = vadd.f32 %v454, %v2619
  %2621 = vdwg.mxu0
  %2622 = vmatpush.bf16.msra.mxu0 %v1836
  %2623 = vmatpush.bf16.msra.mxu0 %v1832
  %2624 = vmatpush.bf16.msra.mxu0 %v1828
  %2625 = vmatpush.bf16.msra.mxu0 %v1824
  %2626 = vmatpush.bf16.msra.mxu0 %v1820
  %2627 = vmatpush.bf16.msra.mxu0 %v1816
  %2628 = vmatpush.bf16.msra.mxu0 %v1812
  %2629 = vmatpush.bf16.msra.mxu0 %v1808
  %2630 = vmatmul.bf16.gmra.mxu0 %v503
  %v2631 = vpop.f32.mrf.mxu0
  %v2632 = vadd.f32 %v2618, %v2631
  %v2633 = vpop.f32.mrf.mxu0
  %v2634 = vadd.f32 %v2620, %v2633
  %2635 = vdwg.mxu0
  %2636 = vmatpush.bf16.msra.mxu0 %v1868
  %2637 = vmatpush.bf16.msra.mxu0 %v1864
  %2638 = vmatpush.bf16.msra.mxu0 %v1860
  %2639 = vmatpush.bf16.msra.mxu0 %v1856
  %2640 = vmatpush.bf16.msra.mxu0 %v1852
  %2641 = vmatpush.bf16.msra.mxu0 %v1848
  %2642 = vmatpush.bf16.msra.mxu0 %v1844
  %2643 = vmatpush.bf16.msra.mxu0 %v1840
  %2644 = vmatmul.bf16.gmra.mxu0 %v504
  %v2645 = vpop.f32.mrf.mxu0
  %v2646 = vadd.f32 %v2632, %v2645
  %v2647 = vpop.f32.mrf.mxu0
  %v2648 = vadd.f32 %v2634, %v2647
  %2649 = vdwg.mxu0
  %2650 = vmatpush.bf16.msra.mxu0 %v1900
  %2651 = vmatpush.bf16.msra.mxu0 %v1896
  %2652 = vmatpush.bf16.msra.mxu0 %v1892
  %2653 = vmatpush.bf16.msra.mxu0 %v1888
  %2654 = vmatpush.bf16.msra.mxu0 %v1884
  %2655 = vmatpush.bf16.msra.mxu0 %v1880
  %2656 = vmatpush.bf16.msra.mxu0 %v1876
  %2657 = vmatpush.bf16.msra.mxu0 %v1872
  %2658 = vmatmul.bf16.gmra.mxu0 %v505
  %v2659 = vpop.f32.mrf.mxu0
  %v2660 = vadd.f32 %v2646, %v2659
  %v2661 = vpop.f32.mrf.mxu0
  %v2662 = vadd.f32 %v2648, %v2661
  %2663 = vdwg.mxu0
  %2664 = vmatpush.bf16.msra.mxu0 %v1932
  %2665 = vmatpush.bf16.msra.mxu0 %v1928
  %2666 = vmatpush.bf16.msra.mxu0 %v1924
  %2667 = vmatpush.bf16.msra.mxu0 %v1920
  %2668 = vmatpush.bf16.msra.mxu0 %v1916
  %2669 = vmatpush.bf16.msra.mxu0 %v1912
  %2670 = vmatpush.bf16.msra.mxu0 %v1908
  %2671 = vmatpush.bf16.msra.mxu0 %v1904
  %2672 = vmatmul.bf16.gmra.mxu0 %v506
  %v2673 = vpop.f32.mrf.mxu0
  %v2674 = vadd.f32 %v2660, %v2673
  %v2675 = vpop.f32.mrf.mxu0
  %v2676 = vadd.f32 %v2662, %v2675
  %2677 = vdwg.mxu0
  %2678 = vmatpush.bf16.msra.mxu0 %v1964
  %2679 = vmatpush.bf16.msra.mxu0 %v1960
  %2680 = vmatpush.bf16.msra.mxu0 %v1956
  %2681 = vmatpush.bf16.msra.mxu0 %v1952
  %2682 = vmatpush.bf16.msra.mxu0 %v1948
  %2683 = vmatpush.bf16.msra.mxu0 %v1944
  %2684 = vmatpush.bf16.msra.mxu0 %v1940
  %2685 = vmatpush.bf16.msra.mxu0 %v1936
  %2686 = vmatmul.bf16.gmra.mxu0 %v507
  %v2687 = vpop.f32.mrf.mxu0
  %v2688 = vadd.f32 %v2674, %v2687
  %v2689 = vpop.f32.mrf.mxu0
  %v2690 = vadd.f32 %v2676, %v2689
  %2691 = vdwg.mxu0
  %2692 = vmatpush.bf16.msra.mxu0 %v1996
  %2693 = vmatpush.bf16.msra.mxu0 %v1992
  %2694 = vmatpush.bf16.msra.mxu0 %v1988
  %2695 = vmatpush.bf16.msra.mxu0 %v1984
  %2696 = vmatpush.bf16.msra.mxu0 %v1980
  %2697 = vmatpush.bf16.msra.mxu0 %v1976
  %2698 = vmatpush.bf16.msra.mxu0 %v1972
  %2699 = vmatpush.bf16.msra.mxu0 %v1968
  %2700 = vmatmul.bf16.gmra.mxu0 %v508
  %v2701 = vpop.f32.mrf.mxu0
  %v2702 = vadd.f32 %v2688, %v2701
  %v2703 = vpop.f32.mrf.mxu0
  %v2704 = vadd.f32 %v2690, %v2703
  %2705 = vdwg.mxu0
  %2706 = vmatpush.bf16.msra.mxu0 %v2028
  %2707 = vmatpush.bf16.msra.mxu0 %v2024
  %2708 = vmatpush.bf16.msra.mxu0 %v2020
  %2709 = vmatpush.bf16.msra.mxu0 %v2016
  %2710 = vmatpush.bf16.msra.mxu0 %v2012
  %2711 = vmatpush.bf16.msra.mxu0 %v2008
  %2712 = vmatpush.bf16.msra.mxu0 %v2004
  %2713 = vmatpush.bf16.msra.mxu0 %v2000
  %2714 = vmatmul.bf16.gmra.mxu0 %v509
  %v2715 = vpop.f32.mrf.mxu0
  %v2716 = vadd.f32 %v2702, %v2715
  %v2717 = vpop.f32.mrf.mxu0
  %v2718 = vadd.f32 %v2704, %v2717
  %2719 = vdwg.mxu0
  %2720 = vmatpush.bf16.msra.mxu0 %v2060
  %2721 = vmatpush.bf16.msra.mxu0 %v2056
  %2722 = vmatpush.bf16.msra.mxu0 %v2052
  %2723 = vmatpush.bf16.msra.mxu0 %v2048
  %2724 = vmatpush.bf16.msra.mxu0 %v2044
  %2725 = vmatpush.bf16.msra.mxu0 %v2040
  %2726 = vmatpush.bf16.msra.mxu0 %v2036
  %2727 = vmatpush.bf16.msra.mxu0 %v2032
  %2728 = vmatmul.bf16.gmra.mxu0 %v510
  %v2729 = vpop.f32.mrf.mxu0
  %v2730 = vadd.f32 %v2716, %v2729
  %v2731 = vpop.f32.mrf.mxu0
  %v2732 = vadd.f32 %v2718, %v2731
  %2733 = vdwg.mxu0
  %2734 = vmatpush.bf16.msra.mxu0 %v2092
  %2735 = vmatpush.bf16.msra.mxu0 %v2088
  %2736 = vmatpush.bf16.msra.mxu0 %v2084
  %2737 = vmatpush.bf16.msra.mxu0 %v2080
  %2738 = vmatpush.bf16.msra.mxu0 %v2076
  %2739 = vmatpush.bf16.msra.mxu0 %v2072
  %2740 = vmatpush.bf16.msra.mxu0 %v2068
  %2741 = vmatpush.bf16.msra.mxu0 %v2064
  %2742 = vmatmul.bf16.gmra.mxu0 %v511
  %v2743 = vpop.f32.mrf.mxu0
  %v2744 = vadd.f32 %v2730, %v2743
  %v2745 = vpop.f32.mrf.mxu0
  %v2746 = vadd.f32 %v2732, %v2745
  %2747 = vdwg.mxu0
  %2748 = vmatpush.bf16.msra.mxu0 %v2124
  %2749 = vmatpush.bf16.msra.mxu0 %v2120
  %2750 = vmatpush.bf16.msra.mxu0 %v2116
  %2751 = vmatpush.bf16.msra.mxu0 %v2112
  %2752 = vmatpush.bf16.msra.mxu0 %v2108
  %2753 = vmatpush.bf16.msra.mxu0 %v2104
  %2754 = vmatpush.bf16.msra.mxu0 %v2100
  %2755 = vmatpush.bf16.msra.mxu0 %v2096
  %2756 = vmatmul.bf16.gmra.mxu0 %v512
  %v2757 = vpop.f32.mrf.mxu0
  %v2758 = vadd.f32 %v2744, %v2757
  %v2759 = vpop.f32.mrf.mxu0
  %v2760 = vadd.f32 %v2746, %v2759
  %2761 = vdwg.mxu0
  %2762 = vmatpush.bf16.msra.mxu0 %v2156
  %2763 = vmatpush.bf16.msra.mxu0 %v2152
  %2764 = vmatpush.bf16.msra.mxu0 %v2148
  %2765 = vmatpush.bf16.msra.mxu0 %v2144
  %2766 = vmatpush.bf16.msra.mxu0 %v2140
  %2767 = vmatpush.bf16.msra.mxu0 %v2136
  %2768 = vmatpush.bf16.msra.mxu0 %v2132
  %2769 = vmatpush.bf16.msra.mxu0 %v2128
  %2770 = vmatmul.bf16.gmra.mxu0 %v513
  %v2771 = vpop.f32.mrf.mxu0
  %v2772 = vadd.f32 %v2758, %v2771
  %v2773 = vpop.f32.mrf.mxu0
  %v2774 = vadd.f32 %v2760, %v2773
  %2775 = vdwg.mxu0
  %2776 = vmatpush.bf16.msra.mxu0 %v2188
  %2777 = vmatpush.bf16.msra.mxu0 %v2184
  %2778 = vmatpush.bf16.msra.mxu0 %v2180
  %2779 = vmatpush.bf16.msra.mxu0 %v2176
  %2780 = vmatpush.bf16.msra.mxu0 %v2172
  %2781 = vmatpush.bf16.msra.mxu0 %v2168
  %2782 = vmatpush.bf16.msra.mxu0 %v2164
  %2783 = vmatpush.bf16.msra.mxu0 %v2160
  %2784 = vmatmul.bf16.gmra.mxu0 %v514
  %v2785 = vpop.f32.mrf.mxu0
  %v2786 = vadd.f32 %v2772, %v2785
  %v2787 = vpop.f32.mrf.mxu0
  %v2788 = vadd.f32 %v2774, %v2787
  %2789 = vdwg.mxu0
  %2790 = vmatpush.bf16.msra.mxu0 %v1805
  %2791 = vmatpush.bf16.msra.mxu0 %v1801
  %2792 = vmatpush.bf16.msra.mxu0 %v1797
  %2793 = vmatpush.bf16.msra.mxu0 %v1793
  %2794 = vmatpush.bf16.msra.mxu0 %v1789
  %2795 = vmatpush.bf16.msra.mxu0 %v1785
  %2796 = vmatpush.bf16.msra.mxu0 %v1781
  %2797 = vmatpush.bf16.msra.mxu0 %v1777
  %2798 = vmatmul.bf16.gmra.mxu0 %v502
  %v2799 = vpop.f32.mrf.mxu0
  %v2800 = vadd.f32 %v455, %v2799
  %v2801 = vpop.f32.mrf.mxu0
  %v2802 = vadd.f32 %v455, %v2801
  %2803 = vdwg.mxu0
  %2804 = vmatpush.bf16.msra.mxu0 %v1837
  %2805 = vmatpush.bf16.msra.mxu0 %v1833
  %2806 = vmatpush.bf16.msra.mxu0 %v1829
  %2807 = vmatpush.bf16.msra.mxu0 %v1825
  %2808 = vmatpush.bf16.msra.mxu0 %v1821
  %2809 = vmatpush.bf16.msra.mxu0 %v1817
  %2810 = vmatpush.bf16.msra.mxu0 %v1813
  %2811 = vmatpush.bf16.msra.mxu0 %v1809
  %2812 = vmatmul.bf16.gmra.mxu0 %v503
  %v2813 = vpop.f32.mrf.mxu0
  %v2814 = vadd.f32 %v2800, %v2813
  %v2815 = vpop.f32.mrf.mxu0
  %v2816 = vadd.f32 %v2802, %v2815
  %2817 = vdwg.mxu0
  %2818 = vmatpush.bf16.msra.mxu0 %v1869
  %2819 = vmatpush.bf16.msra.mxu0 %v1865
  %2820 = vmatpush.bf16.msra.mxu0 %v1861
  %2821 = vmatpush.bf16.msra.mxu0 %v1857
  %2822 = vmatpush.bf16.msra.mxu0 %v1853
  %2823 = vmatpush.bf16.msra.mxu0 %v1849
  %2824 = vmatpush.bf16.msra.mxu0 %v1845
  %2825 = vmatpush.bf16.msra.mxu0 %v1841
  %2826 = vmatmul.bf16.gmra.mxu0 %v504
  %v2827 = vpop.f32.mrf.mxu0
  %v2828 = vadd.f32 %v2814, %v2827
  %v2829 = vpop.f32.mrf.mxu0
  %v2830 = vadd.f32 %v2816, %v2829
  %2831 = vdwg.mxu0
  %2832 = vmatpush.bf16.msra.mxu0 %v1901
  %2833 = vmatpush.bf16.msra.mxu0 %v1897
  %2834 = vmatpush.bf16.msra.mxu0 %v1893
  %2835 = vmatpush.bf16.msra.mxu0 %v1889
  %2836 = vmatpush.bf16.msra.mxu0 %v1885
  %2837 = vmatpush.bf16.msra.mxu0 %v1881
  %2838 = vmatpush.bf16.msra.mxu0 %v1877
  %2839 = vmatpush.bf16.msra.mxu0 %v1873
  %2840 = vmatmul.bf16.gmra.mxu0 %v505
  %v2841 = vpop.f32.mrf.mxu0
  %v2842 = vadd.f32 %v2828, %v2841
  %v2843 = vpop.f32.mrf.mxu0
  %v2844 = vadd.f32 %v2830, %v2843
  %2845 = vdwg.mxu0
  %2846 = vmatpush.bf16.msra.mxu0 %v1933
  %2847 = vmatpush.bf16.msra.mxu0 %v1929
  %2848 = vmatpush.bf16.msra.mxu0 %v1925
  %2849 = vmatpush.bf16.msra.mxu0 %v1921
  %2850 = vmatpush.bf16.msra.mxu0 %v1917
  %2851 = vmatpush.bf16.msra.mxu0 %v1913
  %2852 = vmatpush.bf16.msra.mxu0 %v1909
  %2853 = vmatpush.bf16.msra.mxu0 %v1905
  %2854 = vmatmul.bf16.gmra.mxu0 %v506
  %v2855 = vpop.f32.mrf.mxu0
  %v2856 = vadd.f32 %v2842, %v2855
  %v2857 = vpop.f32.mrf.mxu0
  %v2858 = vadd.f32 %v2844, %v2857
  %2859 = vdwg.mxu0
  %2860 = vmatpush.bf16.msra.mxu0 %v1965
  %2861 = vmatpush.bf16.msra.mxu0 %v1961
  %2862 = vmatpush.bf16.msra.mxu0 %v1957
  %2863 = vmatpush.bf16.msra.mxu0 %v1953
  %2864 = vmatpush.bf16.msra.mxu0 %v1949
  %2865 = vmatpush.bf16.msra.mxu0 %v1945
  %2866 = vmatpush.bf16.msra.mxu0 %v1941
  %2867 = vmatpush.bf16.msra.mxu0 %v1937
  %2868 = vmatmul.bf16.gmra.mxu0 %v507
  %v2869 = vpop.f32.mrf.mxu0
  %v2870 = vadd.f32 %v2856, %v2869
  %v2871 = vpop.f32.mrf.mxu0
  %v2872 = vadd.f32 %v2858, %v2871
  %2873 = vdwg.mxu0
  %2874 = vmatpush.bf16.msra.mxu0 %v1997
  %2875 = vmatpush.bf16.msra.mxu0 %v1993
  %2876 = vmatpush.bf16.msra.mxu0 %v1989
  %2877 = vmatpush.bf16.msra.mxu0 %v1985
  %2878 = vmatpush.bf16.msra.mxu0 %v1981
  %2879 = vmatpush.bf16.msra.mxu0 %v1977
  %2880 = vmatpush.bf16.msra.mxu0 %v1973
  %2881 = vmatpush.bf16.msra.mxu0 %v1969
  %2882 = vmatmul.bf16.gmra.mxu0 %v508
  %v2883 = vpop.f32.mrf.mxu0
  %v2884 = vadd.f32 %v2870, %v2883
  %v2885 = vpop.f32.mrf.mxu0
  %v2886 = vadd.f32 %v2872, %v2885
  %2887 = vdwg.mxu0
  %2888 = vmatpush.bf16.msra.mxu0 %v2029
  %2889 = vmatpush.bf16.msra.mxu0 %v2025
  %2890 = vmatpush.bf16.msra.mxu0 %v2021
  %2891 = vmatpush.bf16.msra.mxu0 %v2017
  %2892 = vmatpush.bf16.msra.mxu0 %v2013
  %2893 = vmatpush.bf16.msra.mxu0 %v2009
  %2894 = vmatpush.bf16.msra.mxu0 %v2005
  %2895 = vmatpush.bf16.msra.mxu0 %v2001
  %2896 = vmatmul.bf16.gmra.mxu0 %v509
  %v2897 = vpop.f32.mrf.mxu0
  %v2898 = vadd.f32 %v2884, %v2897
  %v2899 = vpop.f32.mrf.mxu0
  %v2900 = vadd.f32 %v2886, %v2899
  %2901 = vdwg.mxu0
  %2902 = vmatpush.bf16.msra.mxu0 %v2061
  %2903 = vmatpush.bf16.msra.mxu0 %v2057
  %2904 = vmatpush.bf16.msra.mxu0 %v2053
  %2905 = vmatpush.bf16.msra.mxu0 %v2049
  %2906 = vmatpush.bf16.msra.mxu0 %v2045
  %2907 = vmatpush.bf16.msra.mxu0 %v2041
  %2908 = vmatpush.bf16.msra.mxu0 %v2037
  %2909 = vmatpush.bf16.msra.mxu0 %v2033
  %2910 = vmatmul.bf16.gmra.mxu0 %v510
  %v2911 = vpop.f32.mrf.mxu0
  %v2912 = vadd.f32 %v2898, %v2911
  %v2913 = vpop.f32.mrf.mxu0
  %v2914 = vadd.f32 %v2900, %v2913
  %2915 = vdwg.mxu0
  %2916 = vmatpush.bf16.msra.mxu0 %v2093
  %2917 = vmatpush.bf16.msra.mxu0 %v2089
  %2918 = vmatpush.bf16.msra.mxu0 %v2085
  %2919 = vmatpush.bf16.msra.mxu0 %v2081
  %2920 = vmatpush.bf16.msra.mxu0 %v2077
  %2921 = vmatpush.bf16.msra.mxu0 %v2073
  %2922 = vmatpush.bf16.msra.mxu0 %v2069
  %2923 = vmatpush.bf16.msra.mxu0 %v2065
  %2924 = vmatmul.bf16.gmra.mxu0 %v511
  %v2925 = vpop.f32.mrf.mxu0
  %v2926 = vadd.f32 %v2912, %v2925
  %v2927 = vpop.f32.mrf.mxu0
  %v2928 = vadd.f32 %v2914, %v2927
  %2929 = vdwg.mxu0
  %2930 = vmatpush.bf16.msra.mxu0 %v2125
  %2931 = vmatpush.bf16.msra.mxu0 %v2121
  %2932 = vmatpush.bf16.msra.mxu0 %v2117
  %2933 = vmatpush.bf16.msra.mxu0 %v2113
  %2934 = vmatpush.bf16.msra.mxu0 %v2109
  %2935 = vmatpush.bf16.msra.mxu0 %v2105
  %2936 = vmatpush.bf16.msra.mxu0 %v2101
  %2937 = vmatpush.bf16.msra.mxu0 %v2097
  %2938 = vmatmul.bf16.gmra.mxu0 %v512
  %v2939 = vpop.f32.mrf.mxu0
  %v2940 = vadd.f32 %v2926, %v2939
  %v2941 = vpop.f32.mrf.mxu0
  %v2942 = vadd.f32 %v2928, %v2941
  %2943 = vdwg.mxu0
  %2944 = vmatpush.bf16.msra.mxu0 %v2157
  %2945 = vmatpush.bf16.msra.mxu0 %v2153
  %2946 = vmatpush.bf16.msra.mxu0 %v2149
  %2947 = vmatpush.bf16.msra.mxu0 %v2145
  %2948 = vmatpush.bf16.msra.mxu0 %v2141
  %2949 = vmatpush.bf16.msra.mxu0 %v2137
  %2950 = vmatpush.bf16.msra.mxu0 %v2133
  %2951 = vmatpush.bf16.msra.mxu0 %v2129
  %2952 = vmatmul.bf16.gmra.mxu0 %v513
  %v2953 = vpop.f32.mrf.mxu0
  %v2954 = vadd.f32 %v2940, %v2953
  %v2955 = vpop.f32.mrf.mxu0
  %v2956 = vadd.f32 %v2942, %v2955
  %2957 = vdwg.mxu0
  %2958 = vmatpush.bf16.msra.mxu0 %v2189
  %2959 = vmatpush.bf16.msra.mxu0 %v2185
  %2960 = vmatpush.bf16.msra.mxu0 %v2181
  %2961 = vmatpush.bf16.msra.mxu0 %v2177
  %2962 = vmatpush.bf16.msra.mxu0 %v2173
  %2963 = vmatpush.bf16.msra.mxu0 %v2169
  %2964 = vmatpush.bf16.msra.mxu0 %v2165
  %2965 = vmatpush.bf16.msra.mxu0 %v2161
  %2966 = vmatmul.bf16.gmra.mxu0 %v514
  %v2967 = vpop.f32.mrf.mxu0
  %v2968 = vadd.f32 %v2954, %v2967
  %v2969 = vpop.f32.mrf.mxu0
  %v2970 = vadd.f32 %v2956, %v2969
  %2971 = vdwg.mxu0
  %2972 = vmatpush.bf16.msra.mxu0 %v1806
  %2973 = vmatpush.bf16.msra.mxu0 %v1802
  %2974 = vmatpush.bf16.msra.mxu0 %v1798
  %2975 = vmatpush.bf16.msra.mxu0 %v1794
  %2976 = vmatpush.bf16.msra.mxu0 %v1790
  %2977 = vmatpush.bf16.msra.mxu0 %v1786
  %2978 = vmatpush.bf16.msra.mxu0 %v1782
  %2979 = vmatpush.bf16.msra.mxu0 %v1778
  %2980 = vmatmul.bf16.gmra.mxu0 %v502
  %v2981 = vpop.f32.mrf.mxu0
  %v2982 = vadd.f32 %v456, %v2981
  %v2983 = vpop.f32.mrf.mxu0
  %v2984 = vadd.f32 %v456, %v2983
  %2985 = vdwg.mxu0
  %2986 = vmatpush.bf16.msra.mxu0 %v1838
  %2987 = vmatpush.bf16.msra.mxu0 %v1834
  %2988 = vmatpush.bf16.msra.mxu0 %v1830
  %2989 = vmatpush.bf16.msra.mxu0 %v1826
  %2990 = vmatpush.bf16.msra.mxu0 %v1822
  %2991 = vmatpush.bf16.msra.mxu0 %v1818
  %2992 = vmatpush.bf16.msra.mxu0 %v1814
  %2993 = vmatpush.bf16.msra.mxu0 %v1810
  %2994 = vmatmul.bf16.gmra.mxu0 %v503
  %v2995 = vpop.f32.mrf.mxu0
  %v2996 = vadd.f32 %v2982, %v2995
  %v2997 = vpop.f32.mrf.mxu0
  %v2998 = vadd.f32 %v2984, %v2997
  %2999 = vdwg.mxu0
  %3000 = vmatpush.bf16.msra.mxu0 %v1870
  %3001 = vmatpush.bf16.msra.mxu0 %v1866
  %3002 = vmatpush.bf16.msra.mxu0 %v1862
  %3003 = vmatpush.bf16.msra.mxu0 %v1858
  %3004 = vmatpush.bf16.msra.mxu0 %v1854
  %3005 = vmatpush.bf16.msra.mxu0 %v1850
  %3006 = vmatpush.bf16.msra.mxu0 %v1846
  %3007 = vmatpush.bf16.msra.mxu0 %v1842
  %3008 = vmatmul.bf16.gmra.mxu0 %v504
  %v3009 = vpop.f32.mrf.mxu0
  %v3010 = vadd.f32 %v2996, %v3009
  %v3011 = vpop.f32.mrf.mxu0
  %v3012 = vadd.f32 %v2998, %v3011
  %3013 = vdwg.mxu0
  %3014 = vmatpush.bf16.msra.mxu0 %v1902
  %3015 = vmatpush.bf16.msra.mxu0 %v1898
  %3016 = vmatpush.bf16.msra.mxu0 %v1894
  %3017 = vmatpush.bf16.msra.mxu0 %v1890
  %3018 = vmatpush.bf16.msra.mxu0 %v1886
  %3019 = vmatpush.bf16.msra.mxu0 %v1882
  %3020 = vmatpush.bf16.msra.mxu0 %v1878
  %3021 = vmatpush.bf16.msra.mxu0 %v1874
  %3022 = vmatmul.bf16.gmra.mxu0 %v505
  %v3023 = vpop.f32.mrf.mxu0
  %v3024 = vadd.f32 %v3010, %v3023
  %v3025 = vpop.f32.mrf.mxu0
  %v3026 = vadd.f32 %v3012, %v3025
  %3027 = vdwg.mxu0
  %3028 = vmatpush.bf16.msra.mxu0 %v1934
  %3029 = vmatpush.bf16.msra.mxu0 %v1930
  %3030 = vmatpush.bf16.msra.mxu0 %v1926
  %3031 = vmatpush.bf16.msra.mxu0 %v1922
  %3032 = vmatpush.bf16.msra.mxu0 %v1918
  %3033 = vmatpush.bf16.msra.mxu0 %v1914
  %3034 = vmatpush.bf16.msra.mxu0 %v1910
  %3035 = vmatpush.bf16.msra.mxu0 %v1906
  %3036 = vmatmul.bf16.gmra.mxu0 %v506
  %v3037 = vpop.f32.mrf.mxu0
  %v3038 = vadd.f32 %v3024, %v3037
  %v3039 = vpop.f32.mrf.mxu0
  %v3040 = vadd.f32 %v3026, %v3039
  %3041 = vdwg.mxu0
  %3042 = vmatpush.bf16.msra.mxu0 %v1966
  %3043 = vmatpush.bf16.msra.mxu0 %v1962
  %3044 = vmatpush.bf16.msra.mxu0 %v1958
  %3045 = vmatpush.bf16.msra.mxu0 %v1954
  %3046 = vmatpush.bf16.msra.mxu0 %v1950
  %3047 = vmatpush.bf16.msra.mxu0 %v1946
  %3048 = vmatpush.bf16.msra.mxu0 %v1942
  %3049 = vmatpush.bf16.msra.mxu0 %v1938
  %3050 = vmatmul.bf16.gmra.mxu0 %v507
  %v3051 = vpop.f32.mrf.mxu0
  %v3052 = vadd.f32 %v3038, %v3051
  %v3053 = vpop.f32.mrf.mxu0
  %v3054 = vadd.f32 %v3040, %v3053
  %3055 = vdwg.mxu0
  %3056 = vmatpush.bf16.msra.mxu0 %v1998
  %3057 = vmatpush.bf16.msra.mxu0 %v1994
  %3058 = vmatpush.bf16.msra.mxu0 %v1990
  %3059 = vmatpush.bf16.msra.mxu0 %v1986
  %3060 = vmatpush.bf16.msra.mxu0 %v1982
  %3061 = vmatpush.bf16.msra.mxu0 %v1978
  %3062 = vmatpush.bf16.msra.mxu0 %v1974
  %3063 = vmatpush.bf16.msra.mxu0 %v1970
  %3064 = vmatmul.bf16.gmra.mxu0 %v508
  %v3065 = vpop.f32.mrf.mxu0
  %v3066 = vadd.f32 %v3052, %v3065
  %v3067 = vpop.f32.mrf.mxu0
  %v3068 = vadd.f32 %v3054, %v3067
  %3069 = vdwg.mxu0
  %3070 = vmatpush.bf16.msra.mxu0 %v2030
  %3071 = vmatpush.bf16.msra.mxu0 %v2026
  %3072 = vmatpush.bf16.msra.mxu0 %v2022
  %3073 = vmatpush.bf16.msra.mxu0 %v2018
  %3074 = vmatpush.bf16.msra.mxu0 %v2014
  %3075 = vmatpush.bf16.msra.mxu0 %v2010
  %3076 = vmatpush.bf16.msra.mxu0 %v2006
  %3077 = vmatpush.bf16.msra.mxu0 %v2002
  %3078 = vmatmul.bf16.gmra.mxu0 %v509
  %v3079 = vpop.f32.mrf.mxu0
  %v3080 = vadd.f32 %v3066, %v3079
  %v3081 = vpop.f32.mrf.mxu0
  %v3082 = vadd.f32 %v3068, %v3081
  %3083 = vdwg.mxu0
  %3084 = vmatpush.bf16.msra.mxu0 %v2062
  %3085 = vmatpush.bf16.msra.mxu0 %v2058
  %3086 = vmatpush.bf16.msra.mxu0 %v2054
  %3087 = vmatpush.bf16.msra.mxu0 %v2050
  %3088 = vmatpush.bf16.msra.mxu0 %v2046
  %3089 = vmatpush.bf16.msra.mxu0 %v2042
  %3090 = vmatpush.bf16.msra.mxu0 %v2038
  %3091 = vmatpush.bf16.msra.mxu0 %v2034
  %3092 = vmatmul.bf16.gmra.mxu0 %v510
  %v3093 = vpop.f32.mrf.mxu0
  %v3094 = vadd.f32 %v3080, %v3093
  %v3095 = vpop.f32.mrf.mxu0
  %v3096 = vadd.f32 %v3082, %v3095
  %3097 = vdwg.mxu0
  %3098 = vmatpush.bf16.msra.mxu0 %v2094
  %3099 = vmatpush.bf16.msra.mxu0 %v2090
  %3100 = vmatpush.bf16.msra.mxu0 %v2086
  %3101 = vmatpush.bf16.msra.mxu0 %v2082
  %3102 = vmatpush.bf16.msra.mxu0 %v2078
  %3103 = vmatpush.bf16.msra.mxu0 %v2074
  %3104 = vmatpush.bf16.msra.mxu0 %v2070
  %3105 = vmatpush.bf16.msra.mxu0 %v2066
  %3106 = vmatmul.bf16.gmra.mxu0 %v511
  %v3107 = vpop.f32.mrf.mxu0
  %v3108 = vadd.f32 %v3094, %v3107
  %v3109 = vpop.f32.mrf.mxu0
  %v3110 = vadd.f32 %v3096, %v3109
  %3111 = vdwg.mxu0
  %3112 = vmatpush.bf16.msra.mxu0 %v2126
  %3113 = vmatpush.bf16.msra.mxu0 %v2122
  %3114 = vmatpush.bf16.msra.mxu0 %v2118
  %3115 = vmatpush.bf16.msra.mxu0 %v2114
  %3116 = vmatpush.bf16.msra.mxu0 %v2110
  %3117 = vmatpush.bf16.msra.mxu0 %v2106
  %3118 = vmatpush.bf16.msra.mxu0 %v2102
  %3119 = vmatpush.bf16.msra.mxu0 %v2098
  %3120 = vmatmul.bf16.gmra.mxu0 %v512
  %v3121 = vpop.f32.mrf.mxu0
  %v3122 = vadd.f32 %v3108, %v3121
  %v3123 = vpop.f32.mrf.mxu0
  %v3124 = vadd.f32 %v3110, %v3123
  %3125 = vdwg.mxu0
  %3126 = vmatpush.bf16.msra.mxu0 %v2158
  %3127 = vmatpush.bf16.msra.mxu0 %v2154
  %3128 = vmatpush.bf16.msra.mxu0 %v2150
  %3129 = vmatpush.bf16.msra.mxu0 %v2146
  %3130 = vmatpush.bf16.msra.mxu0 %v2142
  %3131 = vmatpush.bf16.msra.mxu0 %v2138
  %3132 = vmatpush.bf16.msra.mxu0 %v2134
  %3133 = vmatpush.bf16.msra.mxu0 %v2130
  %3134 = vmatmul.bf16.gmra.mxu0 %v513
  %v3135 = vpop.f32.mrf.mxu0
  %v3136 = vadd.f32 %v3122, %v3135
  %v3137 = vpop.f32.mrf.mxu0
  %v3138 = vadd.f32 %v3124, %v3137
  %3139 = vdwg.mxu0
  %3140 = vmatpush.bf16.msra.mxu0 %v2190
  %3141 = vmatpush.bf16.msra.mxu0 %v2186
  %3142 = vmatpush.bf16.msra.mxu0 %v2182
  %3143 = vmatpush.bf16.msra.mxu0 %v2178
  %3144 = vmatpush.bf16.msra.mxu0 %v2174
  %3145 = vmatpush.bf16.msra.mxu0 %v2170
  %3146 = vmatpush.bf16.msra.mxu0 %v2166
  %3147 = vmatpush.bf16.msra.mxu0 %v2162
  %3148 = vmatmul.bf16.gmra.mxu0 %v514
  %v3149 = vpop.f32.mrf.mxu0
  %v3150 = vadd.f32 %v3136, %v3149
  %v3151 = vpop.f32.mrf.mxu0
  %v3152 = vadd.f32 %v3138, %v3151
  %3153 = vdwg.mxu0
  %3154 = vmatpush.bf16.msra.mxu0 %v1807
  %3155 = vmatpush.bf16.msra.mxu0 %v1803
  %3156 = vmatpush.bf16.msra.mxu0 %v1799
  %3157 = vmatpush.bf16.msra.mxu0 %v1795
  %3158 = vmatpush.bf16.msra.mxu0 %v1791
  %3159 = vmatpush.bf16.msra.mxu0 %v1787
  %3160 = vmatpush.bf16.msra.mxu0 %v1783
  %3161 = vmatpush.bf16.msra.mxu0 %v1779
  %3162 = vmatmul.bf16.gmra.mxu0 %v502
  %v3163 = vpop.f32.mrf.mxu0
  %v3164 = vadd.f32 %v457, %v3163
  %v3165 = vpop.f32.mrf.mxu0
  %v3166 = vadd.f32 %v457, %v3165
  %3167 = vdwg.mxu0
  %3168 = vmatpush.bf16.msra.mxu0 %v1839
  %3169 = vmatpush.bf16.msra.mxu0 %v1835
  %3170 = vmatpush.bf16.msra.mxu0 %v1831
  %3171 = vmatpush.bf16.msra.mxu0 %v1827
  %3172 = vmatpush.bf16.msra.mxu0 %v1823
  %3173 = vmatpush.bf16.msra.mxu0 %v1819
  %3174 = vmatpush.bf16.msra.mxu0 %v1815
  %3175 = vmatpush.bf16.msra.mxu0 %v1811
  %3176 = vmatmul.bf16.gmra.mxu0 %v503
  %v3177 = vpop.f32.mrf.mxu0
  %v3178 = vadd.f32 %v3164, %v3177
  %v3179 = vpop.f32.mrf.mxu0
  %v3180 = vadd.f32 %v3166, %v3179
  %3181 = vdwg.mxu0
  %3182 = vmatpush.bf16.msra.mxu0 %v1871
  %3183 = vmatpush.bf16.msra.mxu0 %v1867
  %3184 = vmatpush.bf16.msra.mxu0 %v1863
  %3185 = vmatpush.bf16.msra.mxu0 %v1859
  %3186 = vmatpush.bf16.msra.mxu0 %v1855
  %3187 = vmatpush.bf16.msra.mxu0 %v1851
  %3188 = vmatpush.bf16.msra.mxu0 %v1847
  %3189 = vmatpush.bf16.msra.mxu0 %v1843
  %3190 = vmatmul.bf16.gmra.mxu0 %v504
  %v3191 = vpop.f32.mrf.mxu0
  %v3192 = vadd.f32 %v3178, %v3191
  %v3193 = vpop.f32.mrf.mxu0
  %v3194 = vadd.f32 %v3180, %v3193
  %3195 = vdwg.mxu0
  %3196 = vmatpush.bf16.msra.mxu0 %v1903
  %3197 = vmatpush.bf16.msra.mxu0 %v1899
  %3198 = vmatpush.bf16.msra.mxu0 %v1895
  %3199 = vmatpush.bf16.msra.mxu0 %v1891
  %3200 = vmatpush.bf16.msra.mxu0 %v1887
  %3201 = vmatpush.bf16.msra.mxu0 %v1883
  %3202 = vmatpush.bf16.msra.mxu0 %v1879
  %3203 = vmatpush.bf16.msra.mxu0 %v1875
  %3204 = vmatmul.bf16.gmra.mxu0 %v505
  %v3205 = vpop.f32.mrf.mxu0
  %v3206 = vadd.f32 %v3192, %v3205
  %v3207 = vpop.f32.mrf.mxu0
  %v3208 = vadd.f32 %v3194, %v3207
  %3209 = vdwg.mxu0
  %3210 = vmatpush.bf16.msra.mxu0 %v1935
  %3211 = vmatpush.bf16.msra.mxu0 %v1931
  %3212 = vmatpush.bf16.msra.mxu0 %v1927
  %3213 = vmatpush.bf16.msra.mxu0 %v1923
  %3214 = vmatpush.bf16.msra.mxu0 %v1919
  %3215 = vmatpush.bf16.msra.mxu0 %v1915
  %3216 = vmatpush.bf16.msra.mxu0 %v1911
  %3217 = vmatpush.bf16.msra.mxu0 %v1907
  %3218 = vmatmul.bf16.gmra.mxu0 %v506
  %v3219 = vpop.f32.mrf.mxu0
  %v3220 = vadd.f32 %v3206, %v3219
  %v3221 = vpop.f32.mrf.mxu0
  %v3222 = vadd.f32 %v3208, %v3221
  %3223 = vdwg.mxu0
  %3224 = vmatpush.bf16.msra.mxu0 %v1967
  %3225 = vmatpush.bf16.msra.mxu0 %v1963
  %3226 = vmatpush.bf16.msra.mxu0 %v1959
  %3227 = vmatpush.bf16.msra.mxu0 %v1955
  %3228 = vmatpush.bf16.msra.mxu0 %v1951
  %3229 = vmatpush.bf16.msra.mxu0 %v1947
  %3230 = vmatpush.bf16.msra.mxu0 %v1943
  %3231 = vmatpush.bf16.msra.mxu0 %v1939
  %3232 = vmatmul.bf16.gmra.mxu0 %v507
  %v3233 = vpop.f32.mrf.mxu0
  %v3234 = vadd.f32 %v3220, %v3233
  %v3235 = vpop.f32.mrf.mxu0
  %v3236 = vadd.f32 %v3222, %v3235
  %3237 = vdwg.mxu0
  %3238 = vmatpush.bf16.msra.mxu0 %v1999
  %3239 = vmatpush.bf16.msra.mxu0 %v1995
  %3240 = vmatpush.bf16.msra.mxu0 %v1991
  %3241 = vmatpush.bf16.msra.mxu0 %v1987
  %3242 = vmatpush.bf16.msra.mxu0 %v1983
  %3243 = vmatpush.bf16.msra.mxu0 %v1979
  %3244 = vmatpush.bf16.msra.mxu0 %v1975
  %3245 = vmatpush.bf16.msra.mxu0 %v1971
  %3246 = vmatmul.bf16.gmra.mxu0 %v508
  %v3247 = vpop.f32.mrf.mxu0
  %v3248 = vadd.f32 %v3234, %v3247
  %v3249 = vpop.f32.mrf.mxu0
  %v3250 = vadd.f32 %v3236, %v3249
  %3251 = vdwg.mxu0
  %3252 = vmatpush.bf16.msra.mxu0 %v2031
  %3253 = vmatpush.bf16.msra.mxu0 %v2027
  %3254 = vmatpush.bf16.msra.mxu0 %v2023
  %3255 = vmatpush.bf16.msra.mxu0 %v2019
  %3256 = vmatpush.bf16.msra.mxu0 %v2015
  %3257 = vmatpush.bf16.msra.mxu0 %v2011
  %3258 = vmatpush.bf16.msra.mxu0 %v2007
  %3259 = vmatpush.bf16.msra.mxu0 %v2003
  %3260 = vmatmul.bf16.gmra.mxu0 %v509
  %v3261 = vpop.f32.mrf.mxu0
  %v3262 = vadd.f32 %v3248, %v3261
  %v3263 = vpop.f32.mrf.mxu0
  %v3264 = vadd.f32 %v3250, %v3263
  %3265 = vdwg.mxu0
  %3266 = vmatpush.bf16.msra.mxu0 %v2063
  %3267 = vmatpush.bf16.msra.mxu0 %v2059
  %3268 = vmatpush.bf16.msra.mxu0 %v2055
  %3269 = vmatpush.bf16.msra.mxu0 %v2051
  %3270 = vmatpush.bf16.msra.mxu0 %v2047
  %3271 = vmatpush.bf16.msra.mxu0 %v2043
  %3272 = vmatpush.bf16.msra.mxu0 %v2039
  %3273 = vmatpush.bf16.msra.mxu0 %v2035
  %3274 = vmatmul.bf16.gmra.mxu0 %v510
  %v3275 = vpop.f32.mrf.mxu0
  %v3276 = vadd.f32 %v3262, %v3275
  %v3277 = vpop.f32.mrf.mxu0
  %v3278 = vadd.f32 %v3264, %v3277
  %3279 = vdwg.mxu0
  %3280 = vmatpush.bf16.msra.mxu0 %v2095
  %3281 = vmatpush.bf16.msra.mxu0 %v2091
  %3282 = vmatpush.bf16.msra.mxu0 %v2087
  %3283 = vmatpush.bf16.msra.mxu0 %v2083
  %3284 = vmatpush.bf16.msra.mxu0 %v2079
  %3285 = vmatpush.bf16.msra.mxu0 %v2075
  %3286 = vmatpush.bf16.msra.mxu0 %v2071
  %3287 = vmatpush.bf16.msra.mxu0 %v2067
  %3288 = vmatmul.bf16.gmra.mxu0 %v511
  %v3289 = vpop.f32.mrf.mxu0
  %v3290 = vadd.f32 %v3276, %v3289
  %v3291 = vpop.f32.mrf.mxu0
  %v3292 = vadd.f32 %v3278, %v3291
  %3293 = vdwg.mxu0
  %3294 = vmatpush.bf16.msra.mxu0 %v2127
  %3295 = vmatpush.bf16.msra.mxu0 %v2123
  %3296 = vmatpush.bf16.msra.mxu0 %v2119
  %3297 = vmatpush.bf16.msra.mxu0 %v2115
  %3298 = vmatpush.bf16.msra.mxu0 %v2111
  %3299 = vmatpush.bf16.msra.mxu0 %v2107
  %3300 = vmatpush.bf16.msra.mxu0 %v2103
  %3301 = vmatpush.bf16.msra.mxu0 %v2099
  %3302 = vmatmul.bf16.gmra.mxu0 %v512
  %v3303 = vpop.f32.mrf.mxu0
  %v3304 = vadd.f32 %v3290, %v3303
  %v3305 = vpop.f32.mrf.mxu0
  %v3306 = vadd.f32 %v3292, %v3305
  %3307 = vdwg.mxu0
  %3308 = vmatpush.bf16.msra.mxu0 %v2159
  %3309 = vmatpush.bf16.msra.mxu0 %v2155
  %3310 = vmatpush.bf16.msra.mxu0 %v2151
  %3311 = vmatpush.bf16.msra.mxu0 %v2147
  %3312 = vmatpush.bf16.msra.mxu0 %v2143
  %3313 = vmatpush.bf16.msra.mxu0 %v2139
  %3314 = vmatpush.bf16.msra.mxu0 %v2135
  %3315 = vmatpush.bf16.msra.mxu0 %v2131
  %3316 = vmatmul.bf16.gmra.mxu0 %v513
  %v3317 = vpop.f32.mrf.mxu0
  %v3318 = vadd.f32 %v3304, %v3317
  %v3319 = vpop.f32.mrf.mxu0
  %v3320 = vadd.f32 %v3306, %v3319
  %3321 = vdwg.mxu0
  %3322 = vmatpush.bf16.msra.mxu0 %v2191
  %3323 = vmatpush.bf16.msra.mxu0 %v2187
  %3324 = vmatpush.bf16.msra.mxu0 %v2183
  %3325 = vmatpush.bf16.msra.mxu0 %v2179
  %3326 = vmatpush.bf16.msra.mxu0 %v2175
  %3327 = vmatpush.bf16.msra.mxu0 %v2171
  %3328 = vmatpush.bf16.msra.mxu0 %v2167
  %3329 = vmatpush.bf16.msra.mxu0 %v2163
  %3330 = vmatmul.bf16.gmra.mxu0 %v514
  %v3331 = vpop.f32.mrf.mxu0
  %v3332 = vadd.f32 %v3318, %v3331
  %v3333 = vpop.f32.mrf.mxu0
  %v3334 = vadd.f32 %v3320, %v3333
  %3335 = vdwg.mxu0
  %v3336 = vmax.f32 %v2786, 0.0
  %v3337 = vmax.f32 %v2968, 0.0
  %v3338 = vmax.f32 %v3150, 0.0
  %v3339 = vmax.f32 %v3332, 0.0
  %v3340 = vmax.f32 %v2788, 0.0
  %v3341 = vmax.f32 %v2970, 0.0
  %v3342 = vmax.f32 %v3152, 0.0
  %v3343 = vmax.f32 %v3334, 0.0
  %v3344 = vld [vmem:[%s3] sm:$0xf]
  %v3346 = vperm.slane %v3344, 0
  %v3347 = vperm.slane %v3344, 1
  %v3348 = vperm.slane %v3344, 2
  %v3349 = vperm.slane %v3344, 3
  %v3354 = vmul.f32 %v3336, %v3346
  %v3355 = vmul.f32 %v3337, %v3347
  %v3356 = vmul.f32 %v3338, %v3348
  %v3357 = vmul.f32 %v3339, %v3349
  %v3358 = vmul.f32 %v3340, %v3346
  %v3359 = vmul.f32 %v3341, %v3347
  %v3360 = vmul.f32 %v3342, %v3348
  %v3361 = vmul.f32 %v3343, %v3349
  %v3362 = vadd.f32 %v3354, %v3355
  %v3363 = vadd.f32 %v3362, %v3356
  %vm3364 = vcmask 261120
  %v3365 = vsel %vm3364, %v3357, 0.0
  %v3366 = vadd.f32 %v3363, %v3365
  %3367 = vadd.xlane.f32.xlu0 %v3366
  %v3368 = vpop.xlane.xlu0 %3367
  %v3369 = vadd.f32 %v3358, %v3359
  %v3370 = vadd.f32 %v3369, %v3360
  %v3371 = vsel %vm3364, %v3361, 0.0
  %v3372 = vadd.f32 %v3370, %v3371
  %3373 = vadd.xlane.f32.xlu0 %v3372
  %v3374 = vpop.xlane.xlu0 %3373
  %v3375 = vld [vmem:[#allocation2] sm:$0x1]
  %v3377 = vperm.slane %v3375, 0
  %v3379 = vadd.f32 %v3368, %v3377
  %v3380 = vadd.f32 %v3374, %v3377
  %v3381 = vxor.u32 %v3379, 2147483648
  %v3382 = vxor.u32 %v3380, 2147483648
  %v3383 = vmul.f32 %v3381, 1.442695
  %v3384 = vpow.pop %v3383
  %v3385 = vmul.f32 %v3382, 1.442695
  %v3386 = vpow.pop %v3385
  %v3387 = vadd.f32 %v3384, 1.0
  %v3388 = vadd.f32 %v3386, 1.0
  %v3389 = vrcp.pop %v3387
  %v3390 = vmul.f32 %v3387, %v3389
  %v3391 = vsub.f32 1.0, %v3390
  %v3392 = vmul.f32 %v3389, %v3391
  %v3393 = vadd.f32 %v3389, %v3392
  %vm3394 = vweird.f32 %v3387
  %vm3395 = vweird.f32 %v3389
  %vm3396 = vmor %vm3394, %vm3395
  %v3397 = vsel %vm3396, %v3389, %v3393
  %v3398 = vand.u32 2147483647, %v3387
  %vm3399 = vcmp.eq.f32.partialorder %v3398, 8.507059e+37
  %v3400 = vand.u32 %v3387, 2147483648
  %v3401 = vor.u32 1.1754944e-38, %v3400
  %v3402 = vsel %vm3399, %v3401, %v3397
  %v3403 = vmul.f32 1.0, %v3402
  %v3404 = vrcp.pop %v3388
  %v3405 = vmul.f32 %v3388, %v3404
  %v3406 = vsub.f32 1.0, %v3405
  %v3407 = vmul.f32 %v3404, %v3406
  %v3408 = vadd.f32 %v3404, %v3407
  %vm3409 = vweird.f32 %v3388
  %vm3410 = vweird.f32 %v3404
  %vm3411 = vmor %vm3409, %vm3410
  %v3412 = vsel %vm3411, %v3404, %v3408
  %v3413 = vand.u32 2147483647, %v3388
  %vm3414 = vcmp.eq.f32.partialorder %v3413, 8.507059e+37
  %v3415 = vand.u32 %v3388, 2147483648
  %v3416 = vor.u32 1.1754944e-38, %v3415
  %v3417 = vsel %vm3414, %v3416, %v3412
  %v3418 = vmul.f32 1.0, %v3417
  %vm3419 = vcmask 7168
  %3420 = vst.msk [vmem:[%s5] sm:$0xff] %vm3419, %v3403
  %3421 = vst.msk [vmem:[%s5 + $0x8] sm:$0xff] %vm3419, %v3418
  // Predicated region
  $region22: #{tpu_custom_call.1} parent=0 // pred_check
    _
  $region23: #{tpu_custom_call.1} parent=0 // pred_check_branch
    %3423 = sbr.rel (0) target = $region25
  $region24: #{tpu_custom_call.1} parent=0 // pred_region
    _
  $region25: #{tpu_custom_call.1} parent=0 // pred_fallthru
    _
  // Predicated region
  $region26: #{tpu_custom_call.1} parent=0 // pred_check
    _
  $region27: #{tpu_custom_call.1} parent=0 // pred_check_branch
    %3425 = sbr.rel (0) target = $region29
  $region28: #{tpu_custom_call.1} parent=0 // pred_region
    _
  $region29: #{tpu_custom_call.1} parent=0 // pred_fallthru
    _

</llo_original>
